<compile_context>
chip_gen: v7x
topology: tpu7x:2x2x1
jax: 0.10.0
libtpu: 0.0.40
codegen_flags: <defaults>
</compile_context>

<pallas_src>
import functools

import jax
import jax.numpy as jnp
from jax import lax
from jax.experimental import pallas as pl
from jax.experimental.pallas import tpu as pltpu


def _gcn_kernel(x_ref, wl1_ref, bl1_ref, wl2_ref, bl2_ref,
                wr1_ref, br1_ref, wr2_ref, br2_ref, o_ref,
                *, H, W, kh, kw, cp, cout):
    """One batch element per grid step.

    x_ref  : (1, Cin, S)   S = H*W flat spatial on the lane axis
    w*_ref : (k*Cp, Cg)    output-shift fused weights, row t*Cp + co = W[t, :, co]
    b*_ref : (Cp, 1)       zero-padded bias
    o_ref  : (1, Cout, S)
    """
    S = H * W
    p0 = (kh - 1) // 2
    p1 = (kw - 1) // 2
    f32 = jnp.float32

    x = x_ref[0]                       # (Cin, S), native dtype -> MXU-native operands
    cdtype = x.dtype

    # Hoisted per-offset validity masks for the W-direction taps: a flat lane
    # shift by d crosses image-row boundaries, so positions whose source column
    # w+d falls outside [0, W) must be zeroed.  Computed once, reused by both
    # W-convs (left-branch conv_l2 and right-branch conv_r1).
    w_idx = lax.broadcasted_iota(jnp.int32, (1, S), 1) % W
    w_valid = {}
    for d in range(-p1, p1 + 1):
        if d != 0:
            w_valid[d] = jnp.logical_and(w_idx + d >= 0, w_idx + d < W)

    def shift_flat(zt, D):
        # out[:, s] = zt[:, s + D], zero-filled outside [0, S).
        # Static lane-offset slice + constant zero block: unambiguous zero
        # padding, no per-tap padded buffer.
        if D == 0:
            return zt
        c = zt.shape[0]
        if D > 0:
            return jnp.concatenate([zt[:, D:], jnp.zeros((c, D), zt.dtype)], axis=1)
        return jnp.concatenate([jnp.zeros((c, -D), zt.dtype), zt[:, :S + D]], axis=1)

    def conv_h(u, wf_ref, b_ref):
        # 1-D conv along H (PyTorch kernel (kh,1), padding (p0,0)), output-shift
        # form: one matmul with all taps stacked along M, then shift-and-add the
        # kh (Cp, S) slices.  A shift of d rows is a flat shift of d*W lanes and
        # the zero fill of shift_flat reproduces the zero padding exactly, so no
        # mask is needed.
        z = jnp.dot(wf_ref[...], u, preferred_element_type=f32)       # (kh*Cp, S) f32
        acc = z[p0 * cp:(p0 + 1) * cp, :] + b_ref[...].astype(f32)    # center tap + bias
        for t in range(kh):
            d = t - p0
            if d == 0:
                continue
            acc = acc + shift_flat(z[t * cp:(t + 1) * cp, :], d * W)
        return acc                                                    # (Cp, S) f32

    def conv_w(u, wf_ref, b_ref):
        # 1-D conv along W (PyTorch kernel (1,kw), padding (0,p1)), output-shift
        # form.  A flat shift of d lanes wraps across image rows; zero those
        # positions with the hoisted per-d masks.
        z = jnp.dot(wf_ref[...], u, preferred_element_type=f32)       # (kw*Cp, S) f32
        acc = z[p1 * cp:(p1 + 1) * cp, :] + b_ref[...].astype(f32)
        for t in range(kw):
            d = t - p1
            if d == 0:
                continue
            zt = shift_flat(z[t * cp:(t + 1) * cp, :], d)
            acc = acc + jnp.where(w_valid[d], zt, 0.0)
        return acc                                                    # (Cp, S) f32

    # left branch:  conv_l1 (kh,1) -> conv_l2 (1,kw)
    x_l = conv_h(x, wl1_ref, bl1_ref)
    x_l = conv_w(x_l.astype(cdtype), wl2_ref, bl2_ref)
    # right branch: conv_r1 (1,kw) -> conv_r2 (kh,1)
    x_r = conv_w(x, wr1_ref, br1_ref)
    x_r = conv_h(x_r.astype(cdtype), wr2_ref, br2_ref)

    # fused branch sum, drop channel padding, single lane-dense store
    # (last dim = S; multiple of 128 here -> unmasked vst).
    o_ref[0] = (x_l + x_r)[:cout, :].astype(o_ref.dtype)


def _round_up(a, m):
    return (a + m - 1) // m * m


def _fuse_out_shift(w, cp_out, cg_pad=0):
    """(taps, Cg, Cout) tap-major conv weights -> (taps*cp_out, Cg+cg_pad) matmul LHS.

    Row t*cp_out + co holds W[t, :, co]; padded output-channel rows and padded
    K columns are zero so they contribute nothing.
    """
    taps, cg, cout = w.shape
    wt = jnp.transpose(w, (0, 2, 1))                        # (taps, Cout, Cg)
    wt = jnp.pad(wt, ((0, 0), (0, cp_out - cout), (0, cg_pad)))
    return wt.reshape(taps * cp_out, cg + cg_pad)


def _pad_bias(b, cp):
    b = b.reshape(-1)
    return jnp.pad(b, (0, cp - b.shape[0])).reshape(cp, 1)


def global_conv_module(x_nchw, params, kernel_size):
    """Pallas implementation of _GlobalConvModule.forward.  x_nchw: (N, Cin, H, W)."""
    kh, kw = kernel_size
    # Even kernel sizes with pad=(k-1)//2 change the spatial size in PyTorch;
    # only the intended odd-k GCN configuration is supported here.
    assert kh % 2 == 1 and kw % 2 == 1, "only odd kernel sizes are supported"

    N, Cin, H, W = x_nchw.shape
    Cout = params["wl1"].shape[2]
    S = H * W
    Cp = _round_up(Cout, 8)          # 8-aligned sublane slices of the (k*Cp, S) matmul result
    cdtype = x_nchw.dtype

    # NCHW -> (N, C, H*W): contiguous reshape, no transpose needed.
    # (If S is not a multiple of 128 the final store becomes lane-masked: perf
    #  only, not correctness.)
    x_flat = x_nchw.reshape(N, Cin, S)

    # MXU operands in the input dtype (bf16-native path when x is bf16);
    # biases stay f32 and are added into the f32 accumulator.
    wl1f = _fuse_out_shift(params["wl1"], Cp).astype(cdtype)               # (kh*Cp, Cin)
    wl2f = _fuse_out_shift(params["wl2"], Cp, Cp - Cout).astype(cdtype)    # (kw*Cp, Cp)
    wr1f = _fuse_out_shift(params["wr1"], Cp).astype(cdtype)               # (kw*Cp, Cin)
    wr2f = _fuse_out_shift(params["wr2"], Cp, Cp - Cout).astype(cdtype)    # (kh*Cp, Cp)
    bl1 = _pad_bias(params["bl1"], Cp)
    bl2 = _pad_bias(params["bl2"], Cp)
    br1 = _pad_bias(params["br1"], Cp)
    br2 = _pad_bias(params["br2"], Cp)

    kernel = functools.partial(_gcn_kernel, H=H, W=W, kh=kh, kw=kw, cp=Cp, cout=Cout)

    out_flat = pl.pallas_call(
        kernel,
        out_shape=jax.ShapeDtypeStruct((N, Cout, S), cdtype),
        grid_spec=pltpu.PrefetchScalarGridSpec(
            num_scalar_prefetch=0,
            grid=(N,),
            in_specs=[
                pl.BlockSpec((1, Cin, S), lambda n: (n, 0, 0)),           # x
                pl.BlockSpec((kh * Cp, Cin), lambda n: (0, 0)),           # wl1
                pl.BlockSpec((Cp, 1), lambda n: (0, 0)),                  # bl1
                pl.BlockSpec((kw * Cp, Cp), lambda n: (0, 0)),            # wl2
                pl.BlockSpec((Cp, 1), lambda n: (0, 0)),                  # bl2
                pl.BlockSpec((kw * Cp, Cin), lambda n: (0, 0)),           # wr1
                pl.BlockSpec((Cp, 1), lambda n: (0, 0)),                  # br1
                pl.BlockSpec((kh * Cp, Cp), lambda n: (0, 0)),            # wr2
                pl.BlockSpec((Cp, 1), lambda n: (0, 0)),                  # br2
            ],
            out_specs=pl.BlockSpec((1, Cout, S), lambda n: (n, 0, 0)),
        ),
        compiler_params=pltpu.CompilerParams(
            dimension_semantics=("parallel",),     # independent per batch element
            # raise the scoped-VMEM cap (defaults: 16/32/32 MiB on v5e/v6e/v7x);
            # TODO(synk): re-derive per chip when block sizes grow (v7x: 64 MiB physical).
            vmem_limit_bytes=64 * 1024 * 1024,
        ),
    )(x_flat, wl1f, bl1, wl2f, bl2, wr1f, br1, wr2f, br2)

    return out_flat.reshape(N, Cout, H, W)


def init_params(key, in_dim, out_dim, kh, kw):
    """Deterministic synthetic parameters.  Weights stored tap-major: (taps, Cin, Cout)."""
    ks = jax.random.split(key, 8)
    s = 0.1
    return {
        "wl1": s * jax.random.normal(ks[0], (kh, in_dim, out_dim), jnp.float32),
        "bl1": s * jax.random.normal(ks[1], (1, out_dim), jnp.float32),
        "wl2": s * jax.random.normal(ks[2], (kw, out_dim, out_dim), jnp.float32),
        "bl2": s * jax.random.normal(ks[3], (1, out_dim), jnp.float32),
        "wr1": s * jax.random.normal(ks[4], (kw, in_dim, out_dim), jnp.float32),
        "br1": s * jax.random.normal(ks[5], (1, out_dim), jnp.float32),
        "wr2": s * jax.random.normal(ks[6], (kh, out_dim, out_dim), jnp.float32),
        "br2": s * jax.random.normal(ks[7], (1, out_dim), jnp.float32),
    }


def ref_forward(x_nchw, params, kernel_size):
    """Pure-JAX (XLA conv) reference matching PyTorch Conv2d semantics."""
    kh, kw = kernel_size
    p0, p1 = (kh - 1) // 2, (kw - 1) // 2

    def conv_kh(x, w, b, pad):      # w: (kh, Cin, Cout) -> OIHW (Cout, Cin, kh, 1)
        w_oihw = jnp.transpose(w, (2, 1, 0))[:, :, :, None]
        y = lax.conv_general_dilated(
            x, w_oihw, (1, 1), padding=((pad, pad), (0, 0)),
            dimension_numbers=("NCHW", "OIHW", "NCHW"))
        return y + b.reshape(1, -1, 1, 1)

    def conv_kw(x, w, b, pad):      # w: (kw, Cin, Cout) -> OIHW (Cout, Cin, 1, kw)
        w_oihw = jnp.transpose(w, (2, 1, 0))[:, :, None, :]
        y = lax.conv_general_dilated(
            x, w_oihw, (1, 1), padding=((0, 0), (pad, pad)),
            dimension_numbers=("NCHW", "OIHW", "NCHW"))
        return y + b.reshape(1, -1, 1, 1)

    x_l = conv_kh(x_nchw, params["wl1"], params["bl1"], p0)
    x_l = conv_kw(x_l, params["wl2"], params["bl2"], p1)
    x_r = conv_kw(x_nchw, params["wr1"], params["br1"], p1)
    x_r = conv_kh(x_r, params["wr2"], params["br2"], p0)
    return x_l + x_r


if __name__ == "__main__":
    key = jax.random.PRNGKey(0)
    k_x, k_p = jax.random.split(key)

    in_dim, out_dim = 4, 8
    kernel_size = (7, 7)          # odd kernel -> "same" output size, as the module intends
    N, H, W = 2, 16, 16

    x = jax.random.normal(k_x, (N, in_dim, H, W), jnp.float32)
    params = init_params(k_p, in_dim, out_dim, *kernel_size)

    y = global_conv_module(x, params, kernel_size)
    y = jax.block_until_ready(y)

    assert y.shape == (N, out_dim, H, W), y.shape
    y_ref = ref_forward(x, params, kernel_size)
    err = float(jnp.max(jnp.abs(y - y_ref)))
    assert jnp.allclose(y, y_ref, atol=1e-3, rtol=1e-3), err

    print("KERNEL_OK")
</pallas_src>

<mosaic_0001>
module attributes {stable_mosaic.version = 11 : i64} {
  func.func @_gcn_kernel(%arg0: i32, %arg1: memref<1x4x256xf32, #tpu.memory_space<vmem>>, %arg2: memref<56x4xf32, #tpu.memory_space<vmem>>, %arg3: memref<8x1xf32, #tpu.memory_space<vmem>>, %arg4: memref<56x8xf32, #tpu.memory_space<vmem>>, %arg5: memref<8x1xf32, #tpu.memory_space<vmem>>, %arg6: memref<56x4xf32, #tpu.memory_space<vmem>>, %arg7: memref<8x1xf32, #tpu.memory_space<vmem>>, %arg8: memref<56x8xf32, #tpu.memory_space<vmem>>, %arg9: memref<8x1xf32, #tpu.memory_space<vmem>>, %arg10: memref<1x8x256xf32, #tpu.memory_space<vmem>>) attributes {dimension_semantics = [#tpu.dimension_semantics<parallel>], iteration_bounds = array<i64: 2>, scalar_prefetch = 0 : i64, scratch_operands = 0 : i64, tpu.core_type = #tpu.core_type<tc>, window_params = [{transform_indices = @transform_0, window_bounds = array<i64: 1, 4, 256>}, {pipeline_mode = #tpu.pipeline_mode<synchronous>, transform_indices = @transform_1, window_bounds = array<i64: 56, 4>}, {pipeline_mode = #tpu.pipeline_mode<synchronous>, transform_indices = @transform_2, window_bounds = array<i64: 8, 1>}, {pipeline_mode = #tpu.pipeline_mode<synchronous>, transform_indices = @transform_3, window_bounds = array<i64: 56, 8>}, {pipeline_mode = #tpu.pipeline_mode<synchronous>, transform_indices = @transform_4, window_bounds = array<i64: 8, 1>}, {pipeline_mode = #tpu.pipeline_mode<synchronous>, transform_indices = @transform_5, window_bounds = array<i64: 56, 4>}, {pipeline_mode = #tpu.pipeline_mode<synchronous>, transform_indices = @transform_6, window_bounds = array<i64: 8, 1>}, {pipeline_mode = #tpu.pipeline_mode<synchronous>, transform_indices = @transform_7, window_bounds = array<i64: 56, 8>}, {pipeline_mode = #tpu.pipeline_mode<synchronous>, transform_indices = @transform_8, window_bounds = array<i64: 8, 1>}, {transform_indices = @transform_9, window_bounds = array<i64: 1, 8, 256>}]} {
    %c0 = arith.constant 0 : index
    %c0_0 = arith.constant 0 : index
    %c0_1 = arith.constant 0 : index
    %0 = vector.load %arg1[%c0, %c0_0, %c0_1] : memref<1x4x256xf32, #tpu.memory_space<vmem>>, vector<1x4x256xf32>
    %1 = vector.shape_cast %0 : vector<1x4x256xf32> to vector<4x256xf32>
    %2 = tpu.iota {dimensions = array<i32: 1>} : vector<1x256xi32>
    %c16_i32 = arith.constant 16 : i32
    %c0_i32 = arith.constant 0 : i32
    %3 = arith.cmpi eq, %c16_i32, %c0_i32 : i32
    %c1_i32 = arith.constant 1 : i32
    %4 = arith.select %3, %c1_i32, %c16_i32 : i32
    %5 = vector.broadcast %4 : i32 to vector<1x256xi32>
    %6 = arith.remsi %2, %5 : vector<1x256xi32>
    %c0_i32_2 = arith.constant 0 : i32
    %7 = vector.broadcast %c0_i32_2 : i32 to vector<1x256xi32>
    %8 = arith.cmpi ne, %6, %7 : vector<1x256xi32>
    %c0_i32_3 = arith.constant 0 : i32
    %9 = vector.broadcast %c0_i32_3 : i32 to vector<1x256xi32>
    %10 = arith.cmpi slt, %6, %9 : vector<1x256xi32>
    %c0_i32_4 = arith.constant 0 : i32
    %11 = arith.cmpi slt, %4, %c0_i32_4 : i32
    %12 = vector.broadcast %11 : i1 to vector<1x256xi1>
    %13 = vector.broadcast %12 : vector<1x256xi1> to vector<1x256xi1>
    %14 = arith.xori %10, %13 : vector<1x256xi1>
    %15 = arith.andi %14, %8 : vector<1x256xi1>
    %16 = vector.broadcast %4 : i32 to vector<1x256xi32>
    %17 = arith.addi %6, %16 : vector<1x256xi32>
    %18 = arith.select %15, %17, %6 : vector<1x256xi1>, vector<1x256xi32>
    %c-3_i32 = arith.constant -3 : i32
    %19 = vector.broadcast %c-3_i32 : i32 to vector<1x256xi32>
    %20 = arith.addi %18, %19 : vector<1x256xi32>
    %c0_i32_5 = arith.constant 0 : i32
    %21 = vector.broadcast %c0_i32_5 : i32 to vector<1x256xi32>
    %22 = arith.cmpi sge, %20, %21 : vector<1x256xi32>
    %c-3_i32_6 = arith.constant -3 : i32
    %23 = vector.broadcast %c-3_i32_6 : i32 to vector<1x256xi32>
    %24 = arith.addi %18, %23 : vector<1x256xi32>
    %c16_i32_7 = arith.constant 16 : i32
    %25 = vector.broadcast %c16_i32_7 : i32 to vector<1x256xi32>
    %26 = arith.cmpi slt, %24, %25 : vector<1x256xi32>
    %27 = arith.andi %22, %26 : vector<1x256xi1>
    %c-2_i32 = arith.constant -2 : i32
    %28 = vector.broadcast %c-2_i32 : i32 to vector<1x256xi32>
    %29 = arith.addi %18, %28 : vector<1x256xi32>
    %c0_i32_8 = arith.constant 0 : i32
    %30 = vector.broadcast %c0_i32_8 : i32 to vector<1x256xi32>
    %31 = arith.cmpi sge, %29, %30 : vector<1x256xi32>
    %c-2_i32_9 = arith.constant -2 : i32
    %32 = vector.broadcast %c-2_i32_9 : i32 to vector<1x256xi32>
    %33 = arith.addi %18, %32 : vector<1x256xi32>
    %c16_i32_10 = arith.constant 16 : i32
    %34 = vector.broadcast %c16_i32_10 : i32 to vector<1x256xi32>
    %35 = arith.cmpi slt, %33, %34 : vector<1x256xi32>
    %36 = arith.andi %31, %35 : vector<1x256xi1>
    %c-1_i32 = arith.constant -1 : i32
    %37 = vector.broadcast %c-1_i32 : i32 to vector<1x256xi32>
    %38 = arith.addi %18, %37 : vector<1x256xi32>
    %c0_i32_11 = arith.constant 0 : i32
    %39 = vector.broadcast %c0_i32_11 : i32 to vector<1x256xi32>
    %40 = arith.cmpi sge, %38, %39 : vector<1x256xi32>
    %c-1_i32_12 = arith.constant -1 : i32
    %41 = vector.broadcast %c-1_i32_12 : i32 to vector<1x256xi32>
    %42 = arith.addi %18, %41 : vector<1x256xi32>
    %c16_i32_13 = arith.constant 16 : i32
    %43 = vector.broadcast %c16_i32_13 : i32 to vector<1x256xi32>
    %44 = arith.cmpi slt, %42, %43 : vector<1x256xi32>
    %45 = arith.andi %40, %44 : vector<1x256xi1>
    %c1_i32_14 = arith.constant 1 : i32
    %46 = vector.broadcast %c1_i32_14 : i32 to vector<1x256xi32>
    %47 = arith.addi %18, %46 : vector<1x256xi32>
    %c0_i32_15 = arith.constant 0 : i32
    %48 = vector.broadcast %c0_i32_15 : i32 to vector<1x256xi32>
    %49 = arith.cmpi sge, %47, %48 : vector<1x256xi32>
    %c1_i32_16 = arith.constant 1 : i32
    %50 = vector.broadcast %c1_i32_16 : i32 to vector<1x256xi32>
    %51 = arith.addi %18, %50 : vector<1x256xi32>
    %c16_i32_17 = arith.constant 16 : i32
    %52 = vector.broadcast %c16_i32_17 : i32 to vector<1x256xi32>
    %53 = arith.cmpi slt, %51, %52 : vector<1x256xi32>
    %54 = arith.andi %49, %53 : vector<1x256xi1>
    %c2_i32 = arith.constant 2 : i32
    %55 = vector.broadcast %c2_i32 : i32 to vector<1x256xi32>
    %56 = arith.addi %18, %55 : vector<1x256xi32>
    %c0_i32_18 = arith.constant 0 : i32
    %57 = vector.broadcast %c0_i32_18 : i32 to vector<1x256xi32>
    %58 = arith.cmpi sge, %56, %57 : vector<1x256xi32>
    %c2_i32_19 = arith.constant 2 : i32
    %59 = vector.broadcast %c2_i32_19 : i32 to vector<1x256xi32>
    %60 = arith.addi %18, %59 : vector<1x256xi32>
    %c16_i32_20 = arith.constant 16 : i32
    %61 = vector.broadcast %c16_i32_20 : i32 to vector<1x256xi32>
    %62 = arith.cmpi slt, %60, %61 : vector<1x256xi32>
    %63 = arith.andi %58, %62 : vector<1x256xi1>
    %c3_i32 = arith.constant 3 : i32
    %64 = vector.broadcast %c3_i32 : i32 to vector<1x256xi32>
    %65 = arith.addi %18, %64 : vector<1x256xi32>
    %c0_i32_21 = arith.constant 0 : i32
    %66 = vector.broadcast %c0_i32_21 : i32 to vector<1x256xi32>
    %67 = arith.cmpi sge, %65, %66 : vector<1x256xi32>
    %c3_i32_22 = arith.constant 3 : i32
    %68 = vector.broadcast %c3_i32_22 : i32 to vector<1x256xi32>
    %69 = arith.addi %18, %68 : vector<1x256xi32>
    %c16_i32_23 = arith.constant 16 : i32
    %70 = vector.broadcast %c16_i32_23 : i32 to vector<1x256xi32>
    %71 = arith.cmpi slt, %69, %70 : vector<1x256xi32>
    %72 = arith.andi %67, %71 : vector<1x256xi1>
    %c0_24 = arith.constant 0 : index
    %c0_25 = arith.constant 0 : index
    %73 = vector.load %arg2[%c0_24, %c0_25] : memref<56x4xf32, #tpu.memory_space<vmem>>, vector<56x4xf32>
    %cst = arith.constant dense<0.000000e+00> : vector<56x256xf32>
    %74 = tpu.matmul %73, %1, %cst {dimension_numbers = #tpu.dot_dimension_numbers<[1], [0], [0], [1], [0, 0, 1, 1], [], []>} : vector<56x4xf32>, vector<4x256xf32>, vector<56x256xf32> -> vector<56x256xf32>
    %75 = vector.extract_strided_slice %74 {offsets = [24, 0], sizes = [8, 256], strides = [1, 1]} : vector<56x256xf32> to vector<8x256xf32>
    %c0_26 = arith.constant 0 : index
    %c0_27 = arith.constant 0 : index
    %76 = vector.load %arg3[%c0_26, %c0_27] : memref<8x1xf32, #tpu.memory_space<vmem>>, vector<8x1xf32>
    %77 = vector.broadcast %76 : vector<8x1xf32> to vector<8x256xf32>
    %78 = arith.addf %75, %77 : vector<8x256xf32>
    %79 = vector.extract_strided_slice %74 {offsets = [0, 0], sizes = [8, 256], strides = [1, 1]} : vector<56x256xf32> to vector<8x256xf32>
    %cst_28 = arith.constant 0.000000e+00 : f32
    %80 = vector.broadcast %cst_28 : f32 to vector<8x48xf32>
    %81 = vector.extract_strided_slice %79 {offsets = [0, 0], sizes = [8, 208], strides = [1, 1]} : vector<8x256xf32> to vector<8x208xf32>
    %82 = tpu.concatenate %80, %81 in 1 : vector<8x48xf32>, vector<8x208xf32> -> vector<8x256xf32>
    %83 = arith.addf %78, %82 : vector<8x256xf32>
    %84 = vector.extract_strided_slice %74 {offsets = [8, 0], sizes = [8, 256], strides = [1, 1]} : vector<56x256xf32> to vector<8x256xf32>
    %cst_29 = arith.constant 0.000000e+00 : f32
    %85 = vector.broadcast %cst_29 : f32 to vector<8x32xf32>
    %86 = vector.extract_strided_slice %84 {offsets = [0, 0], sizes = [8, 224], strides = [1, 1]} : vector<8x256xf32> to vector<8x224xf32>
    %87 = tpu.concatenate %85, %86 in 1 : vector<8x32xf32>, vector<8x224xf32> -> vector<8x256xf32>
    %88 = arith.addf %83, %87 : vector<8x256xf32>
    %89 = vector.extract_strided_slice %74 {offsets = [16, 0], sizes = [8, 256], strides = [1, 1]} : vector<56x256xf32> to vector<8x256xf32>
    %cst_30 = arith.constant 0.000000e+00 : f32
    %90 = vector.broadcast %cst_30 : f32 to vector<8x16xf32>
    %91 = vector.extract_strided_slice %89 {offsets = [0, 0], sizes = [8, 240], strides = [1, 1]} : vector<8x256xf32> to vector<8x240xf32>
    %92 = tpu.concatenate %90, %91 in 1 : vector<8x16xf32>, vector<8x240xf32> -> vector<8x256xf32>
    %93 = arith.addf %88, %92 : vector<8x256xf32>
    %94 = vector.extract_strided_slice %74 {offsets = [32, 0], sizes = [8, 256], strides = [1, 1]} : vector<56x256xf32> to vector<8x256xf32>
    %95 = vector.extract_strided_slice %94 {offsets = [0, 16], sizes = [8, 240], strides = [1, 1]} : vector<8x256xf32> to vector<8x240xf32>
    %cst_31 = arith.constant 0.000000e+00 : f32
    %96 = vector.broadcast %cst_31 : f32 to vector<8x16xf32>
    %97 = tpu.concatenate %95, %96 in 1 : vector<8x240xf32>, vector<8x16xf32> -> vector<8x256xf32>
    %98 = arith.addf %93, %97 : vector<8x256xf32>
    %99 = vector.extract_strided_slice %74 {offsets = [40, 0], sizes = [8, 256], strides = [1, 1]} : vector<56x256xf32> to vector<8x256xf32>
    %100 = vector.extract_strided_slice %99 {offsets = [0, 32], sizes = [8, 224], strides = [1, 1]} : vector<8x256xf32> to vector<8x224xf32>
    %cst_32 = arith.constant 0.000000e+00 : f32
    %101 = vector.broadcast %cst_32 : f32 to vector<8x32xf32>
    %102 = tpu.concatenate %100, %101 in 1 : vector<8x224xf32>, vector<8x32xf32> -> vector<8x256xf32>
    %103 = arith.addf %98, %102 : vector<8x256xf32>
    %104 = vector.extract_strided_slice %74 {offsets = [48, 0], sizes = [8, 256], strides = [1, 1]} : vector<56x256xf32> to vector<8x256xf32>
    %105 = vector.extract_strided_slice %104 {offsets = [0, 48], sizes = [8, 208], strides = [1, 1]} : vector<8x256xf32> to vector<8x208xf32>
    %cst_33 = arith.constant 0.000000e+00 : f32
    %106 = vector.broadcast %cst_33 : f32 to vector<8x48xf32>
    %107 = tpu.concatenate %105, %106 in 1 : vector<8x208xf32>, vector<8x48xf32> -> vector<8x256xf32>
    %108 = arith.addf %103, %107 : vector<8x256xf32>
    %c0_34 = arith.constant 0 : index
    %c0_35 = arith.constant 0 : index
    %109 = vector.load %arg4[%c0_34, %c0_35] : memref<56x8xf32, #tpu.memory_space<vmem>>, vector<56x8xf32>
    %cst_36 = arith.constant dense<0.000000e+00> : vector<56x256xf32>
    %110 = tpu.matmul %109, %108, %cst_36 {dimension_numbers = #tpu.dot_dimension_numbers<[1], [0], [0], [1], [0, 0, 1, 1], [], []>} : vector<56x8xf32>, vector<8x256xf32>, vector<56x256xf32> -> vector<56x256xf32>
    %111 = vector.extract_strided_slice %110 {offsets = [24, 0], sizes = [8, 256], strides = [1, 1]} : vector<56x256xf32> to vector<8x256xf32>
    %c0_37 = arith.constant 0 : index
    %c0_38 = arith.constant 0 : index
    %112 = vector.load %arg5[%c0_37, %c0_38] : memref<8x1xf32, #tpu.memory_space<vmem>>, vector<8x1xf32>
    %113 = vector.broadcast %112 : vector<8x1xf32> to vector<8x256xf32>
    %114 = arith.addf %111, %113 : vector<8x256xf32>
    %115 = vector.extract_strided_slice %110 {offsets = [0, 0], sizes = [8, 256], strides = [1, 1]} : vector<56x256xf32> to vector<8x256xf32>
    %cst_39 = arith.constant 0.000000e+00 : f32
    %116 = vector.broadcast %cst_39 : f32 to vector<8x3xf32>
    %117 = vector.extract_strided_slice %115 {offsets = [0, 0], sizes = [8, 253], strides = [1, 1]} : vector<8x256xf32> to vector<8x253xf32>
    %118 = tpu.concatenate %116, %117 in 1 : vector<8x3xf32>, vector<8x253xf32> -> vector<8x256xf32>
    %cst_40 = arith.constant 0.000000e+00 : f32
    %119 = vector.shape_cast %27 : vector<1x256xi1> to vector<1x256xi1>
    %120 = vector.broadcast %119 : vector<1x256xi1> to vector<8x256xi1>
    %121 = vector.broadcast %cst_40 : f32 to vector<8x256xf32>
    %122 = arith.select %120, %118, %121 : vector<8x256xi1>, vector<8x256xf32>
    %123 = arith.addf %114, %122 : vector<8x256xf32>
    %124 = vector.extract_strided_slice %110 {offsets = [8, 0], sizes = [8, 256], strides = [1, 1]} : vector<56x256xf32> to vector<8x256xf32>
    %cst_41 = arith.constant 0.000000e+00 : f32
    %125 = vector.broadcast %cst_41 : f32 to vector<8x2xf32>
    %126 = vector.extract_strided_slice %124 {offsets = [0, 0], sizes = [8, 254], strides = [1, 1]} : vector<8x256xf32> to vector<8x254xf32>
    %127 = tpu.concatenate %125, %126 in 1 : vector<8x2xf32>, vector<8x254xf32> -> vector<8x256xf32>
    %cst_42 = arith.constant 0.000000e+00 : f32
    %128 = vector.shape_cast %36 : vector<1x256xi1> to vector<1x256xi1>
    %129 = vector.broadcast %128 : vector<1x256xi1> to vector<8x256xi1>
    %130 = vector.broadcast %cst_42 : f32 to vector<8x256xf32>
    %131 = arith.select %129, %127, %130 : vector<8x256xi1>, vector<8x256xf32>
    %132 = arith.addf %123, %131 : vector<8x256xf32>
    %133 = vector.extract_strided_slice %110 {offsets = [16, 0], sizes = [8, 256], strides = [1, 1]} : vector<56x256xf32> to vector<8x256xf32>
    %cst_43 = arith.constant 0.000000e+00 : f32
    %134 = vector.broadcast %cst_43 : f32 to vector<8x1xf32>
    %135 = vector.extract_strided_slice %133 {offsets = [0, 0], sizes = [8, 255], strides = [1, 1]} : vector<8x256xf32> to vector<8x255xf32>
    %136 = tpu.concatenate %134, %135 in 1 : vector<8x1xf32>, vector<8x255xf32> -> vector<8x256xf32>
    %cst_44 = arith.constant 0.000000e+00 : f32
    %137 = vector.shape_cast %45 : vector<1x256xi1> to vector<1x256xi1>
    %138 = vector.broadcast %137 : vector<1x256xi1> to vector<8x256xi1>
    %139 = vector.broadcast %cst_44 : f32 to vector<8x256xf32>
    %140 = arith.select %138, %136, %139 : vector<8x256xi1>, vector<8x256xf32>
    %141 = arith.addf %132, %140 : vector<8x256xf32>
    %142 = vector.extract_strided_slice %110 {offsets = [32, 0], sizes = [8, 256], strides = [1, 1]} : vector<56x256xf32> to vector<8x256xf32>
    %143 = vector.extract_strided_slice %142 {offsets = [0, 1], sizes = [8, 255], strides = [1, 1]} : vector<8x256xf32> to vector<8x255xf32>
    %cst_45 = arith.constant 0.000000e+00 : f32
    %144 = vector.broadcast %cst_45 : f32 to vector<8x1xf32>
    %145 = tpu.concatenate %143, %144 in 1 : vector<8x255xf32>, vector<8x1xf32> -> vector<8x256xf32>
    %cst_46 = arith.constant 0.000000e+00 : f32
    %146 = vector.shape_cast %54 : vector<1x256xi1> to vector<1x256xi1>
    %147 = vector.broadcast %146 : vector<1x256xi1> to vector<8x256xi1>
    %148 = vector.broadcast %cst_46 : f32 to vector<8x256xf32>
    %149 = arith.select %147, %145, %148 : vector<8x256xi1>, vector<8x256xf32>
    %150 = arith.addf %141, %149 : vector<8x256xf32>
    %151 = vector.extract_strided_slice %110 {offsets = [40, 0], sizes = [8, 256], strides = [1, 1]} : vector<56x256xf32> to vector<8x256xf32>
    %152 = vector.extract_strided_slice %151 {offsets = [0, 2], sizes = [8, 254], strides = [1, 1]} : vector<8x256xf32> to vector<8x254xf32>
    %cst_47 = arith.constant 0.000000e+00 : f32
    %153 = vector.broadcast %cst_47 : f32 to vector<8x2xf32>
    %154 = tpu.concatenate %152, %153 in 1 : vector<8x254xf32>, vector<8x2xf32> -> vector<8x256xf32>
    %cst_48 = arith.constant 0.000000e+00 : f32
    %155 = vector.shape_cast %63 : vector<1x256xi1> to vector<1x256xi1>
    %156 = vector.broadcast %155 : vector<1x256xi1> to vector<8x256xi1>
    %157 = vector.broadcast %cst_48 : f32 to vector<8x256xf32>
    %158 = arith.select %156, %154, %157 : vector<8x256xi1>, vector<8x256xf32>
    %159 = arith.addf %150, %158 : vector<8x256xf32>
    %160 = vector.extract_strided_slice %110 {offsets = [48, 0], sizes = [8, 256], strides = [1, 1]} : vector<56x256xf32> to vector<8x256xf32>
    %161 = vector.extract_strided_slice %160 {offsets = [0, 3], sizes = [8, 253], strides = [1, 1]} : vector<8x256xf32> to vector<8x253xf32>
    %cst_49 = arith.constant 0.000000e+00 : f32
    %162 = vector.broadcast %cst_49 : f32 to vector<8x3xf32>
    %163 = tpu.concatenate %161, %162 in 1 : vector<8x253xf32>, vector<8x3xf32> -> vector<8x256xf32>
    %cst_50 = arith.constant 0.000000e+00 : f32
    %164 = vector.shape_cast %72 : vector<1x256xi1> to vector<1x256xi1>
    %165 = vector.broadcast %164 : vector<1x256xi1> to vector<8x256xi1>
    %166 = vector.broadcast %cst_50 : f32 to vector<8x256xf32>
    %167 = arith.select %165, %163, %166 : vector<8x256xi1>, vector<8x256xf32>
    %168 = arith.addf %159, %167 : vector<8x256xf32>
    %c0_51 = arith.constant 0 : index
    %c0_52 = arith.constant 0 : index
    %169 = vector.load %arg6[%c0_51, %c0_52] : memref<56x4xf32, #tpu.memory_space<vmem>>, vector<56x4xf32>
    %cst_53 = arith.constant dense<0.000000e+00> : vector<56x256xf32>
    %170 = tpu.matmul %169, %1, %cst_53 {dimension_numbers = #tpu.dot_dimension_numbers<[1], [0], [0], [1], [0, 0, 1, 1], [], []>} : vector<56x4xf32>, vector<4x256xf32>, vector<56x256xf32> -> vector<56x256xf32>
    %171 = vector.extract_strided_slice %170 {offsets = [24, 0], sizes = [8, 256], strides = [1, 1]} : vector<56x256xf32> to vector<8x256xf32>
    %c0_54 = arith.constant 0 : index
    %c0_55 = arith.constant 0 : index
    %172 = vector.load %arg7[%c0_54, %c0_55] : memref<8x1xf32, #tpu.memory_space<vmem>>, vector<8x1xf32>
    %173 = vector.broadcast %172 : vector<8x1xf32> to vector<8x256xf32>
    %174 = arith.addf %171, %173 : vector<8x256xf32>
    %175 = vector.extract_strided_slice %170 {offsets = [0, 0], sizes = [8, 256], strides = [1, 1]} : vector<56x256xf32> to vector<8x256xf32>
    %cst_56 = arith.constant 0.000000e+00 : f32
    %176 = vector.broadcast %cst_56 : f32 to vector<8x3xf32>
    %177 = vector.extract_strided_slice %175 {offsets = [0, 0], sizes = [8, 253], strides = [1, 1]} : vector<8x256xf32> to vector<8x253xf32>
    %178 = tpu.concatenate %176, %177 in 1 : vector<8x3xf32>, vector<8x253xf32> -> vector<8x256xf32>
    %cst_57 = arith.constant 0.000000e+00 : f32
    %179 = vector.shape_cast %27 : vector<1x256xi1> to vector<1x256xi1>
    %180 = vector.broadcast %179 : vector<1x256xi1> to vector<8x256xi1>
    %181 = vector.broadcast %cst_57 : f32 to vector<8x256xf32>
    %182 = arith.select %180, %178, %181 : vector<8x256xi1>, vector<8x256xf32>
    %183 = arith.addf %174, %182 : vector<8x256xf32>
    %184 = vector.extract_strided_slice %170 {offsets = [8, 0], sizes = [8, 256], strides = [1, 1]} : vector<56x256xf32> to vector<8x256xf32>
    %cst_58 = arith.constant 0.000000e+00 : f32
    %185 = vector.broadcast %cst_58 : f32 to vector<8x2xf32>
    %186 = vector.extract_strided_slice %184 {offsets = [0, 0], sizes = [8, 254], strides = [1, 1]} : vector<8x256xf32> to vector<8x254xf32>
    %187 = tpu.concatenate %185, %186 in 1 : vector<8x2xf32>, vector<8x254xf32> -> vector<8x256xf32>
    %cst_59 = arith.constant 0.000000e+00 : f32
    %188 = vector.shape_cast %36 : vector<1x256xi1> to vector<1x256xi1>
    %189 = vector.broadcast %188 : vector<1x256xi1> to vector<8x256xi1>
    %190 = vector.broadcast %cst_59 : f32 to vector<8x256xf32>
    %191 = arith.select %189, %187, %190 : vector<8x256xi1>, vector<8x256xf32>
    %192 = arith.addf %183, %191 : vector<8x256xf32>
    %193 = vector.extract_strided_slice %170 {offsets = [16, 0], sizes = [8, 256], strides = [1, 1]} : vector<56x256xf32> to vector<8x256xf32>
    %cst_60 = arith.constant 0.000000e+00 : f32
    %194 = vector.broadcast %cst_60 : f32 to vector<8x1xf32>
    %195 = vector.extract_strided_slice %193 {offsets = [0, 0], sizes = [8, 255], strides = [1, 1]} : vector<8x256xf32> to vector<8x255xf32>
    %196 = tpu.concatenate %194, %195 in 1 : vector<8x1xf32>, vector<8x255xf32> -> vector<8x256xf32>
    %cst_61 = arith.constant 0.000000e+00 : f32
    %197 = vector.shape_cast %45 : vector<1x256xi1> to vector<1x256xi1>
    %198 = vector.broadcast %197 : vector<1x256xi1> to vector<8x256xi1>
    %199 = vector.broadcast %cst_61 : f32 to vector<8x256xf32>
    %200 = arith.select %198, %196, %199 : vector<8x256xi1>, vector<8x256xf32>
    %201 = arith.addf %192, %200 : vector<8x256xf32>
    %202 = vector.extract_strided_slice %170 {offsets = [32, 0], sizes = [8, 256], strides = [1, 1]} : vector<56x256xf32> to vector<8x256xf32>
    %203 = vector.extract_strided_slice %202 {offsets = [0, 1], sizes = [8, 255], strides = [1, 1]} : vector<8x256xf32> to vector<8x255xf32>
    %cst_62 = arith.constant 0.000000e+00 : f32
    %204 = vector.broadcast %cst_62 : f32 to vector<8x1xf32>
    %205 = tpu.concatenate %203, %204 in 1 : vector<8x255xf32>, vector<8x1xf32> -> vector<8x256xf32>
    %cst_63 = arith.constant 0.000000e+00 : f32
    %206 = vector.shape_cast %54 : vector<1x256xi1> to vector<1x256xi1>
    %207 = vector.broadcast %206 : vector<1x256xi1> to vector<8x256xi1>
    %208 = vector.broadcast %cst_63 : f32 to vector<8x256xf32>
    %209 = arith.select %207, %205, %208 : vector<8x256xi1>, vector<8x256xf32>
    %210 = arith.addf %201, %209 : vector<8x256xf32>
    %211 = vector.extract_strided_slice %170 {offsets = [40, 0], sizes = [8, 256], strides = [1, 1]} : vector<56x256xf32> to vector<8x256xf32>
    %212 = vector.extract_strided_slice %211 {offsets = [0, 2], sizes = [8, 254], strides = [1, 1]} : vector<8x256xf32> to vector<8x254xf32>
    %cst_64 = arith.constant 0.000000e+00 : f32
    %213 = vector.broadcast %cst_64 : f32 to vector<8x2xf32>
    %214 = tpu.concatenate %212, %213 in 1 : vector<8x254xf32>, vector<8x2xf32> -> vector<8x256xf32>
    %cst_65 = arith.constant 0.000000e+00 : f32
    %215 = vector.shape_cast %63 : vector<1x256xi1> to vector<1x256xi1>
    %216 = vector.broadcast %215 : vector<1x256xi1> to vector<8x256xi1>
    %217 = vector.broadcast %cst_65 : f32 to vector<8x256xf32>
    %218 = arith.select %216, %214, %217 : vector<8x256xi1>, vector<8x256xf32>
    %219 = arith.addf %210, %218 : vector<8x256xf32>
    %220 = vector.extract_strided_slice %170 {offsets = [48, 0], sizes = [8, 256], strides = [1, 1]} : vector<56x256xf32> to vector<8x256xf32>
    %221 = vector.extract_strided_slice %220 {offsets = [0, 3], sizes = [8, 253], strides = [1, 1]} : vector<8x256xf32> to vector<8x253xf32>
    %cst_66 = arith.constant 0.000000e+00 : f32
    %222 = vector.broadcast %cst_66 : f32 to vector<8x3xf32>
    %223 = tpu.concatenate %221, %222 in 1 : vector<8x253xf32>, vector<8x3xf32> -> vector<8x256xf32>
    %cst_67 = arith.constant 0.000000e+00 : f32
    %224 = vector.shape_cast %72 : vector<1x256xi1> to vector<1x256xi1>
    %225 = vector.broadcast %224 : vector<1x256xi1> to vector<8x256xi1>
    %226 = vector.broadcast %cst_67 : f32 to vector<8x256xf32>
    %227 = arith.select %225, %223, %226 : vector<8x256xi1>, vector<8x256xf32>
    %228 = arith.addf %219, %227 : vector<8x256xf32>
    %c0_68 = arith.constant 0 : index
    %c0_69 = arith.constant 0 : index
    %229 = vector.load %arg8[%c0_68, %c0_69] : memref<56x8xf32, #tpu.memory_space<vmem>>, vector<56x8xf32>
    %cst_70 = arith.constant dense<0.000000e+00> : vector<56x256xf32>
    %230 = tpu.matmul %229, %228, %cst_70 {dimension_numbers = #tpu.dot_dimension_numbers<[1], [0], [0], [1], [0, 0, 1, 1], [], []>} : vector<56x8xf32>, vector<8x256xf32>, vector<56x256xf32> -> vector<56x256xf32>
    %231 = vector.extract_strided_slice %230 {offsets = [24, 0], sizes = [8, 256], strides = [1, 1]} : vector<56x256xf32> to vector<8x256xf32>
    %c0_71 = arith.constant 0 : index
    %c0_72 = arith.constant 0 : index
    %232 = vector.load %arg9[%c0_71, %c0_72] : memref<8x1xf32, #tpu.memory_space<vmem>>, vector<8x1xf32>
    %233 = vector.broadcast %232 : vector<8x1xf32> to vector<8x256xf32>
    %234 = arith.addf %231, %233 : vector<8x256xf32>
    %235 = vector.extract_strided_slice %230 {offsets = [0, 0], sizes = [8, 256], strides = [1, 1]} : vector<56x256xf32> to vector<8x256xf32>
    %cst_73 = arith.constant 0.000000e+00 : f32
    %236 = vector.broadcast %cst_73 : f32 to vector<8x48xf32>
    %237 = vector.extract_strided_slice %235 {offsets = [0, 0], sizes = [8, 208], strides = [1, 1]} : vector<8x256xf32> to vector<8x208xf32>
    %238 = tpu.concatenate %236, %237 in 1 : vector<8x48xf32>, vector<8x208xf32> -> vector<8x256xf32>
    %239 = arith.addf %234, %238 : vector<8x256xf32>
    %240 = vector.extract_strided_slice %230 {offsets = [8, 0], sizes = [8, 256], strides = [1, 1]} : vector<56x256xf32> to vector<8x256xf32>
    %cst_74 = arith.constant 0.000000e+00 : f32
    %241 = vector.broadcast %cst_74 : f32 to vector<8x32xf32>
    %242 = vector.extract_strided_slice %240 {offsets = [0, 0], sizes = [8, 224], strides = [1, 1]} : vector<8x256xf32> to vector<8x224xf32>
    %243 = tpu.concatenate %241, %242 in 1 : vector<8x32xf32>, vector<8x224xf32> -> vector<8x256xf32>
    %244 = arith.addf %239, %243 : vector<8x256xf32>
    %245 = vector.extract_strided_slice %230 {offsets = [16, 0], sizes = [8, 256], strides = [1, 1]} : vector<56x256xf32> to vector<8x256xf32>
    %cst_75 = arith.constant 0.000000e+00 : f32
    %246 = vector.broadcast %cst_75 : f32 to vector<8x16xf32>
    %247 = vector.extract_strided_slice %245 {offsets = [0, 0], sizes = [8, 240], strides = [1, 1]} : vector<8x256xf32> to vector<8x240xf32>
    %248 = tpu.concatenate %246, %247 in 1 : vector<8x16xf32>, vector<8x240xf32> -> vector<8x256xf32>
    %249 = arith.addf %244, %248 : vector<8x256xf32>
    %250 = vector.extract_strided_slice %230 {offsets = [32, 0], sizes = [8, 256], strides = [1, 1]} : vector<56x256xf32> to vector<8x256xf32>
    %251 = vector.extract_strided_slice %250 {offsets = [0, 16], sizes = [8, 240], strides = [1, 1]} : vector<8x256xf32> to vector<8x240xf32>
    %cst_76 = arith.constant 0.000000e+00 : f32
    %252 = vector.broadcast %cst_76 : f32 to vector<8x16xf32>
    %253 = tpu.concatenate %251, %252 in 1 : vector<8x240xf32>, vector<8x16xf32> -> vector<8x256xf32>
    %254 = arith.addf %249, %253 : vector<8x256xf32>
    %255 = vector.extract_strided_slice %230 {offsets = [40, 0], sizes = [8, 256], strides = [1, 1]} : vector<56x256xf32> to vector<8x256xf32>
    %256 = vector.extract_strided_slice %255 {offsets = [0, 32], sizes = [8, 224], strides = [1, 1]} : vector<8x256xf32> to vector<8x224xf32>
    %cst_77 = arith.constant 0.000000e+00 : f32
    %257 = vector.broadcast %cst_77 : f32 to vector<8x32xf32>
    %258 = tpu.concatenate %256, %257 in 1 : vector<8x224xf32>, vector<8x32xf32> -> vector<8x256xf32>
    %259 = arith.addf %254, %258 : vector<8x256xf32>
    %260 = vector.extract_strided_slice %230 {offsets = [48, 0], sizes = [8, 256], strides = [1, 1]} : vector<56x256xf32> to vector<8x256xf32>
    %261 = vector.extract_strided_slice %260 {offsets = [0, 48], sizes = [8, 208], strides = [1, 1]} : vector<8x256xf32> to vector<8x208xf32>
    %cst_78 = arith.constant 0.000000e+00 : f32
    %262 = vector.broadcast %cst_78 : f32 to vector<8x48xf32>
    %263 = tpu.concatenate %261, %262 in 1 : vector<8x208xf32>, vector<8x48xf32> -> vector<8x256xf32>
    %264 = arith.addf %259, %263 : vector<8x256xf32>
    %265 = arith.addf %168, %264 : vector<8x256xf32>
    %c0_79 = arith.constant 0 : index
    %c0_80 = arith.constant 0 : index
    %c0_81 = arith.constant 0 : index
    %266 = vector.load %arg10[%c0_79, %c0_80, %c0_81] : memref<1x8x256xf32, #tpu.memory_space<vmem>>, vector<1x8x256xf32>
    %267 = vector.shape_cast %266 : vector<1x8x256xf32> to vector<8x256xf32>
    %268 = vector.shape_cast %265 : vector<8x256xf32> to vector<1x8x256xf32>
    tpu.vector_store %arg10[%c0_79, %c0_80, %c0_81], %268 {strides = array<i32>} : memref<1x8x256xf32, #tpu.memory_space<vmem>>, vector<1x8x256xf32>,
    return
  }
  func.func @transform_0(%arg0: i32) -> (i32, i32, i32) {
    %c0_i32 = arith.constant 0 : i32
    %c0_i32_0 = arith.constant 0 : i32
    %c0_i32_1 = arith.constant 0 : i32
    return %arg0, %c0_i32, %c0_i32_0 : i32, i32, i32
  }
  func.func @transform_1(%arg0: i32) -> (i32, i32) {
    %c0_i32 = arith.constant 0 : i32
    %c0_i32_0 = arith.constant 0 : i32
    %c0_i32_1 = arith.constant 0 : i32
    return %c0_i32, %c0_i32_0 : i32, i32
  }
  func.func @transform_2(%arg0: i32) -> (i32, i32) {
    %c0_i32 = arith.constant 0 : i32
    %c0_i32_0 = arith.constant 0 : i32
    %c0_i32_1 = arith.constant 0 : i32
    return %c0_i32, %c0_i32_0 : i32, i32
  }
  func.func @transform_3(%arg0: i32) -> (i32, i32) {
    %c0_i32 = arith.constant 0 : i32
    %c0_i32_0 = arith.constant 0 : i32
    %c0_i32_1 = arith.constant 0 : i32
    return %c0_i32, %c0_i32_0 : i32, i32
  }
  func.func @transform_4(%arg0: i32) -> (i32, i32) {
    %c0_i32 = arith.constant 0 : i32
    %c0_i32_0 = arith.constant 0 : i32
    %c0_i32_1 = arith.constant 0 : i32
    return %c0_i32, %c0_i32_0 : i32, i32
  }
  func.func @transform_5(%arg0: i32) -> (i32, i32) {
    %c0_i32 = arith.constant 0 : i32
    %c0_i32_0 = arith.constant 0 : i32
    %c0_i32_1 = arith.constant 0 : i32
    return %c0_i32, %c0_i32_0 : i32, i32
  }
  func.func @transform_6(%arg0: i32) -> (i32, i32) {
    %c0_i32 = arith.constant 0 : i32
    %c0_i32_0 = arith.constant 0 : i32
    %c0_i32_1 = arith.constant 0 : i32
    return %c0_i32, %c0_i32_0 : i32, i32
  }
  func.func @transform_7(%arg0: i32) -> (i32, i32) {
    %c0_i32 = arith.constant 0 : i32
    %c0_i32_0 = arith.constant 0 : i32
    %c0_i32_1 = arith.constant 0 : i32
    return %c0_i32, %c0_i32_0 : i32, i32
  }
  func.func @transform_8(%arg0: i32) -> (i32, i32) {
    %c0_i32 = arith.constant 0 : i32
    %c0_i32_0 = arith.constant 0 : i32
    %c0_i32_1 = arith.constant 0 : i32
    return %c0_i32, %c0_i32_0 : i32, i32
  }
  func.func @transform_9(%arg0: i32) -> (i32, i32, i32) {
    %c0_i32 = arith.constant 0 : i32
    %c0_i32_0 = arith.constant 0 : i32
    %c0_i32_1 = arith.constant 0 : i32
    return %arg0, %c0_i32, %c0_i32_0 : i32, i32, i32
  }
}

</mosaic_0001>

<llo_original>
// kernel: tpu_custom_call.1
$region0: #{tpu_custom_call.1}
  #allocation0 [shape = 'u32[]', space=smem, size = 0x4, offset = 0x4, fixed_abs, tag = 'smem constant byte address 0x4 - core index']
  #allocation1 [shape = 'u32[144,128]{1,0:T(1,128)}', space=vmem, size = 0x12000, scoped, tag = 'internal scratch']
  %s0 = inlined_call_operand.hbm [shape: f32[2,4,256], index: 0, kind: input, shape index: {}]
  %s1 = inlined_call_operand.hbm [shape: f32[56,4], index: 1, kind: input, shape index: {}]
  %s2 = inlined_call_operand.hbm [shape: f32[8,1], index: 2, kind: input, shape index: {}]
  %s3 = inlined_call_operand.hbm [shape: f32[56,8], index: 3, kind: input, shape index: {}]
  %s4 = inlined_call_operand.hbm [shape: f32[8,1], index: 4, kind: input, shape index: {}]
  %s5 = inlined_call_operand.hbm [shape: f32[56,4], index: 5, kind: input, shape index: {}]
  %s6 = inlined_call_operand.hbm [shape: f32[8,1], index: 6, kind: input, shape index: {}]
  %s7 = inlined_call_operand.hbm [shape: f32[56,8], index: 7, kind: input, shape index: {}]
  %s8 = inlined_call_operand.hbm [shape: f32[8,1], index: 8, kind: input, shape index: {}]
  %s9 = inlined_call_operand.hbm [shape: f32[2,8,256], index: 9, kind: output, shape index: {}]
  %s10 = sld [smem:[#allocation0]]
  $region105: #{tpu_custom_call.1} parent=0
    _
  %s12 = ssub.s32 1, %s10
  %s13 = scalar_select 0, %s12, %s10
  $region1: #{tpu_custom_call.1} parent=0
    #allocation2 [shape = 'u8[8192]{0}', space=vmem, size = 0x2000, scoped, tag = 'input window, operand 0']
    #allocation3 [shape = 's32[2]{0}', space=sflag, size = 0x8, scoped, tag = 'scoped memory for tpu_custom_call.1']
    #allocation4 [shape = 's32[2]{0}', space=sflag, size = 0x8, scoped, tag = 'scoped memory for tpu_custom_call.1']
    #allocation5 [shape = 'u8[28672]{0}', space=vmem, size = 0x7000, scoped, tag = 'input window, operand 1, single buffered']
    #allocation6 [shape = 's32[1]{0}', space=sflag, size = 0x4, scoped, tag = 'scoped memory for tpu_custom_call.1']
    #allocation7 [shape = 'u8[4096]{0}', space=vmem, size = 0x1000, scoped, tag = 'input window, operand 2, single buffered']
    #allocation8 [shape = 'u8[28672]{0}', space=vmem, size = 0x7000, scoped, tag = 'input window, operand 3, single buffered']
    #allocation9 [shape = 's32[1]{0}', space=sflag, size = 0x4, scoped, tag = 'scoped memory for tpu_custom_call.1']
    #allocation10 [shape = 'u8[4096]{0}', space=vmem, size = 0x1000, scoped, tag = 'input window, operand 4, single buffered']
    #allocation11 [shape = 'u8[28672]{0}', space=vmem, size = 0x7000, scoped, tag = 'input window, operand 5, single buffered']
    #allocation12 [shape = 's32[1]{0}', space=sflag, size = 0x4, scoped, tag = 'scoped memory for tpu_custom_call.1']
    #allocation13 [shape = 'u8[4096]{0}', space=vmem, size = 0x1000, scoped, tag = 'input window, operand 6, single buffered']
    #allocation14 [shape = 'u8[28672]{0}', space=vmem, size = 0x7000, scoped, tag = 'input window, operand 7, single buffered']
    #allocation15 [shape = 's32[1]{0}', space=sflag, size = 0x4, scoped, tag = 'scoped memory for tpu_custom_call.1']
    #allocation16 [shape = 'u8[4096]{0}', space=vmem, size = 0x1000, scoped, tag = 'input window, operand 8, single buffered']
    #allocation17 [shape = 'u8[16384]{0}', space=vmem, size = 0x4000, scoped, tag = 'output window, operand 0']
    %14 = vsyncpa [#allocation3], 0
    %s15 = scalar_lea.sflag [#allocation3], 1
    %16 = vsyncpa %s15, 0
    %17 = vsyncpa [#allocation6], 0
    %18 = vsyncpa [#allocation9], 0
    %19 = vsyncpa [#allocation12], 0
    %20 = vsyncpa [#allocation15], 0
    %21 = vsyncpa [#allocation4], 0
    %s22 = scalar_lea.sflag [#allocation4], 1
    %23 = vsyncpa %s22, 0
    loop: start=0, step=1, limit=4
    $region2: #{tpu_custom_call.1} parent=1 // loop_pre_header
      _
    $region3: #{tpu_custom_call.1} parent=1 // loop_header
      %s25 = sphi 0, %s29
      %p26 = scmp.ge.s32.totalorder %s25, 4
      %s35 = sphi 0, %s37
      %s38 = sphi 0, %s35
      %s39 = sphi 0, %s38
      %s55 = sphi 0, %s39
      %s59 = sphi 0, %s59
      %s61 = sphi 0, %s59
      %s62 = sphi 0, %s61
      %s76 = sphi 0, %s62
      %s80 = sphi 0, %s80
      %s82 = sphi 0, %s80
      %s83 = sphi 0, %s82
      %s97 = sphi 0, %s83
      %s101 = sphi 0, %s101
      %s103 = sphi 0, %s101
      %s104 = sphi 0, %s103
      %s118 = sphi 0, %s104
      %s122 = sphi 0, %s122
      %s124 = sphi 0, %s122
      %s125 = sphi 0, %s124
      %s139 = sphi 0, %s125
      %s143 = sphi 0, %s143
      %s145 = sphi 0, %s143
      %s146 = sphi 0, %s145
      %s160 = sphi 0, %s146
      %s164 = sphi 0, %s164
      %s166 = sphi 0, %s164
      %s167 = sphi 0, %s166
      %s181 = sphi 0, %s167
      %s185 = sphi 0, %s185
      %s187 = sphi 0, %s185
      %s188 = sphi 0, %s187
      %s202 = sphi 0, %s188
      %s206 = sphi 0, %s206
      %s208 = sphi 0, %s206
      %s209 = sphi 0, %s208
      %s223 = sphi 0, %s209
      %s229 = sphi 0, %s231
      %s232 = sphi 0, %s229
      %s233 = sphi 0, %s232
      %s249 = sphi 0, %s233
    $region4: #{tpu_custom_call.1} parent=1 // loop_header_branch
      %28 = sbr.rel (%p26) target = $region8
    $region5: #{tpu_custom_call.1} parent=1 // loop_body
      %s30 = ssub.s32 %s25, 1
      %s31 = ssub.s32 %s25, 2
      %s32 = sadd.s32 %s25, 1
      %s33 = ssub.s32 %s25, %s32
      %p34 = scmp.eq.s32.totalorder %s33, 0
      %s36 = sadd.s32 %s35, 1
      %s37 = scalar_select %p34, %s35, %s36
      %p40 = pneg %p34
      %p41 = scmp.eq.s32.totalorder %s25, 1
      %p42 = por %p40, %p41
      %p43 = scmp.ne.s32.totalorder %s35, %s38
      %p44 = scmp.eq.s32.totalorder %s25, 0
      %p45 = por %p43, %p44
      %p46 = scmp.ne.s32.totalorder %s35, %s38
      %p47 = scmp.eq.s32.totalorder %s30, 1
      %p48 = por %p46, %p47
      %p49 = scmp.ne.s32.totalorder %s38, %s39
      %p50 = scmp.eq.s32.totalorder %s30, 0
      %p51 = por %p49, %p50
      %p52 = scmp.ne.s32.totalorder %s38, %s39
      %p53 = scmp.eq.s32.totalorder %s31, 1
      %p54 = por %p52, %p53
      %p56 = scmp.ne.s32.totalorder %s39, %s55
      %p57 = scmp.eq.s32.totalorder %s31, 0
      %p58 = por %p56, %p57
      %s60 = sadd.s32 %s59, 1
      %p63 = scmp.eq.s32.totalorder %s25, 1
      %p64 = scmp.ne.s32.totalorder %s59, %s61
      %p65 = scmp.eq.s32.totalorder %s25, 0
      %p66 = por %p64, %p65
      %p67 = scmp.ne.s32.totalorder %s59, %s61
      %p68 = scmp.eq.s32.totalorder %s30, 1
      %p69 = por %p67, %p68
      %p70 = scmp.ne.s32.totalorder %s61, %s62
      %p71 = scmp.eq.s32.totalorder %s30, 0
      %p72 = por %p70, %p71
      %p73 = scmp.ne.s32.totalorder %s61, %s62
      %p74 = scmp.eq.s32.totalorder %s31, 1
      %p75 = por %p73, %p74
      %p77 = scmp.ne.s32.totalorder %s62, %s76
      %p78 = scmp.eq.s32.totalorder %s31, 0
      %p79 = por %p77, %p78
      %s81 = sadd.s32 %s80, 1
      %p84 = scmp.eq.s32.totalorder %s25, 1
      %p85 = scmp.ne.s32.totalorder %s80, %s82
      %p86 = scmp.eq.s32.totalorder %s25, 0
      %p87 = por %p85, %p86
      %p88 = scmp.ne.s32.totalorder %s80, %s82
      %p89 = scmp.eq.s32.totalorder %s30, 1
      %p90 = por %p88, %p89
      %p91 = scmp.ne.s32.totalorder %s82, %s83
      %p92 = scmp.eq.s32.totalorder %s30, 0
      %p93 = por %p91, %p92
      %p94 = scmp.ne.s32.totalorder %s82, %s83
      %p95 = scmp.eq.s32.totalorder %s31, 1
      %p96 = por %p94, %p95
      %p98 = scmp.ne.s32.totalorder %s83, %s97
      %p99 = scmp.eq.s32.totalorder %s31, 0
      %p100 = por %p98, %p99
      %s102 = sadd.s32 %s101, 1
      %p105 = scmp.eq.s32.totalorder %s25, 1
      %p106 = scmp.ne.s32.totalorder %s101, %s103
      %p107 = scmp.eq.s32.totalorder %s25, 0
      %p108 = por %p106, %p107
      %p109 = scmp.ne.s32.totalorder %s101, %s103
      %p110 = scmp.eq.s32.totalorder %s30, 1
      %p111 = por %p109, %p110
      %p112 = scmp.ne.s32.totalorder %s103, %s104
      %p113 = scmp.eq.s32.totalorder %s30, 0
      %p114 = por %p112, %p113
      %p115 = scmp.ne.s32.totalorder %s103, %s104
      %p116 = scmp.eq.s32.totalorder %s31, 1
      %p117 = por %p115, %p116
      %p119 = scmp.ne.s32.totalorder %s104, %s118
      %p120 = scmp.eq.s32.totalorder %s31, 0
      %p121 = por %p119, %p120
      %s123 = sadd.s32 %s122, 1
      %p126 = scmp.eq.s32.totalorder %s25, 1
      %p127 = scmp.ne.s32.totalorder %s122, %s124
      %p128 = scmp.eq.s32.totalorder %s25, 0
      %p129 = por %p127, %p128
      %p130 = scmp.ne.s32.totalorder %s122, %s124
      %p131 = scmp.eq.s32.totalorder %s30, 1
      %p132 = por %p130, %p131
      %p133 = scmp.ne.s32.totalorder %s124, %s125
      %p134 = scmp.eq.s32.totalorder %s30, 0
      %p135 = por %p133, %p134
      %p136 = scmp.ne.s32.totalorder %s124, %s125
      %p137 = scmp.eq.s32.totalorder %s31, 1
      %p138 = por %p136, %p137
      %p140 = scmp.ne.s32.totalorder %s125, %s139
      %p141 = scmp.eq.s32.totalorder %s31, 0
      %p142 = por %p140, %p141
      %s144 = sadd.s32 %s143, 1
      %p147 = scmp.eq.s32.totalorder %s25, 1
      %p148 = scmp.ne.s32.totalorder %s143, %s145
      %p149 = scmp.eq.s32.totalorder %s25, 0
      %p150 = por %p148, %p149
      %p151 = scmp.ne.s32.totalorder %s143, %s145
      %p152 = scmp.eq.s32.totalorder %s30, 1
      %p153 = por %p151, %p152
      %p154 = scmp.ne.s32.totalorder %s145, %s146
      %p155 = scmp.eq.s32.totalorder %s30, 0
      %p156 = por %p154, %p155
      %p157 = scmp.ne.s32.totalorder %s145, %s146
      %p158 = scmp.eq.s32.totalorder %s31, 1
      %p159 = por %p157, %p158
      %p161 = scmp.ne.s32.totalorder %s146, %s160
      %p162 = scmp.eq.s32.totalorder %s31, 0
      %p163 = por %p161, %p162
      %s165 = sadd.s32 %s164, 1
      %p168 = scmp.eq.s32.totalorder %s25, 1
      %p169 = scmp.ne.s32.totalorder %s164, %s166
      %p170 = scmp.eq.s32.totalorder %s25, 0
      %p171 = por %p169, %p170
      %p172 = scmp.ne.s32.totalorder %s164, %s166
      %p173 = scmp.eq.s32.totalorder %s30, 1
      %p174 = por %p172, %p173
      %p175 = scmp.ne.s32.totalorder %s166, %s167
      %p176 = scmp.eq.s32.totalorder %s30, 0
      %p177 = por %p175, %p176
      %p178 = scmp.ne.s32.totalorder %s166, %s167
      %p179 = scmp.eq.s32.totalorder %s31, 1
      %p180 = por %p178, %p179
      %p182 = scmp.ne.s32.totalorder %s167, %s181
      %p183 = scmp.eq.s32.totalorder %s31, 0
      %p184 = por %p182, %p183
      %s186 = sadd.s32 %s185, 1
      %p189 = scmp.eq.s32.totalorder %s25, 1
      %p190 = scmp.ne.s32.totalorder %s185, %s187
      %p191 = scmp.eq.s32.totalorder %s25, 0
      %p192 = por %p190, %p191
      %p193 = scmp.ne.s32.totalorder %s185, %s187
      %p194 = scmp.eq.s32.totalorder %s30, 1
      %p195 = por %p193, %p194
      %p196 = scmp.ne.s32.totalorder %s187, %s188
      %p197 = scmp.eq.s32.totalorder %s30, 0
      %p198 = por %p196, %p197
      %p199 = scmp.ne.s32.totalorder %s187, %s188
      %p200 = scmp.eq.s32.totalorder %s31, 1
      %p201 = por %p199, %p200
      %p203 = scmp.ne.s32.totalorder %s188, %s202
      %p204 = scmp.eq.s32.totalorder %s31, 0
      %p205 = por %p203, %p204
      %s207 = sadd.s32 %s206, 1
      %p210 = scmp.eq.s32.totalorder %s25, 1
      %p211 = scmp.ne.s32.totalorder %s206, %s208
      %p212 = scmp.eq.s32.totalorder %s25, 0
      %p213 = por %p211, %p212
      %p214 = scmp.ne.s32.totalorder %s206, %s208
      %p215 = scmp.eq.s32.totalorder %s30, 1
      %p216 = por %p214, %p215
      %p217 = scmp.ne.s32.totalorder %s208, %s209
      %p218 = scmp.eq.s32.totalorder %s30, 0
      %p219 = por %p217, %p218
      %p220 = scmp.ne.s32.totalorder %s208, %s209
      %p221 = scmp.eq.s32.totalorder %s31, 1
      %p222 = por %p220, %p221
      %p224 = scmp.ne.s32.totalorder %s209, %s223
      %p225 = scmp.eq.s32.totalorder %s31, 0
      %p226 = por %p224, %p225
      %s227 = ssub.s32 %s25, %s32
      %p228 = scmp.eq.s32.totalorder %s227, 0
      %s230 = sadd.s32 %s229, 1
      %s231 = scalar_select %p228, %s229, %s230
      %p234 = pneg %p228
      %p235 = scmp.eq.s32.totalorder %s25, 1
      %p236 = por %p234, %p235
      %p237 = scmp.ne.s32.totalorder %s229, %s232
      %p238 = scmp.eq.s32.totalorder %s25, 0
      %p239 = por %p237, %p238
      %p240 = scmp.ne.s32.totalorder %s229, %s232
      %p241 = scmp.eq.s32.totalorder %s30, 1
      %p242 = por %p240, %p241
      %p243 = scmp.ne.s32.totalorder %s232, %s233
      %p244 = scmp.eq.s32.totalorder %s30, 0
      %p245 = por %p243, %p244
      %p246 = scmp.ne.s32.totalorder %s232, %s233
      %p247 = scmp.eq.s32.totalorder %s31, 1
      %p248 = por %p246, %p247
      %p250 = scmp.ne.s32.totalorder %s233, %s249
      %p251 = scmp.eq.s32.totalorder %s31, 0
      %p252 = por %p250, %p251
      %p253 = scmp.le.s32.totalorder 1, %s25
      %p254 = scmp.lt.s32.totalorder %s25, 3
      %p255 = pnand %p253, %p254
      %p256 = pneg %p255
      // Predicated region
      $region9: #{tpu_custom_call.1} parent=5 // pred_check
        _
      $region10: #{tpu_custom_call.1} parent=5 // pred_check_branch
        %258 = sbr.rel (%p255) target = $region12
      $region11: #{tpu_custom_call.1} parent=5 // pred_region
        %s259 = ssub.s32 %s25, 1
        // Predicated region
        $region13: #{tpu_custom_call.1} parent=11 // pred_check
          %p260 = pneg %p72
        $region14: #{tpu_custom_call.1} parent=11 // pred_check_branch
          %262 = sbr.rel (%p260) target = $region16
        $region15: #{tpu_custom_call.1} parent=11 // pred_region
          %s264 = ssub.s32 896, 896
          %265 = vsyncadd [#allocation6], %s264
          %s266 = sshll.u32 [#allocation5], 4
          %s267 = int_to_ptr.vmem [resolvable:$true] %s266
          %272 = dma.hbm_to_vmem [thread:$0]  %s1, 896, %s267, [#allocation6], 128, 128, 8
        $region16: #{tpu_custom_call.1} parent=11 // pred_fallthru
          _
        // Predicated region
        $region17: #{tpu_custom_call.1} parent=11 // pred_check
          %p273 = pneg %p93
        $region18: #{tpu_custom_call.1} parent=11 // pred_check_branch
          %275 = sbr.rel (%p273) target = $region20
        $region19: #{tpu_custom_call.1} parent=11 // pred_region
          %s277 = ssub.s32 128, 128
          %278 = vsyncadd [#allocation6], %s277
          %s280 = sshll.u32 [#allocation7], 4
          %s281 = int_to_ptr.vmem [resolvable:$true] %s280
          %283 = dma.hbm_to_vmem [thread:$0]  %s2, 128, %s281, [#allocation6]
        $region20: #{tpu_custom_call.1} parent=11 // pred_fallthru
          _
        // Predicated region
        $region21: #{tpu_custom_call.1} parent=11 // pred_check
          %p284 = pneg %p114
        $region22: #{tpu_custom_call.1} parent=11 // pred_check_branch
          %286 = sbr.rel (%p284) target = $region24
        $region23: #{tpu_custom_call.1} parent=11 // pred_region
          %s288 = ssub.s32 896, 896
          %289 = vsyncadd [#allocation9], %s288
          %s290 = sshll.u32 [#allocation8], 4
          %s291 = int_to_ptr.vmem [resolvable:$true] %s290
          %296 = dma.hbm_to_vmem [thread:$0]  %s3, 896, %s291, [#allocation9], 128, 128, 8
        $region24: #{tpu_custom_call.1} parent=11 // pred_fallthru
          _
        // Predicated region
        $region25: #{tpu_custom_call.1} parent=11 // pred_check
          %p297 = pneg %p135
        $region26: #{tpu_custom_call.1} parent=11 // pred_check_branch
          %299 = sbr.rel (%p297) target = $region28
        $region27: #{tpu_custom_call.1} parent=11 // pred_region
          %s301 = ssub.s32 128, 128
          %302 = vsyncadd [#allocation9], %s301
          %s304 = sshll.u32 [#allocation10], 4
          %s305 = int_to_ptr.vmem [resolvable:$true] %s304
          %307 = dma.hbm_to_vmem [thread:$0]  %s4, 128, %s305, [#allocation9]
        $region28: #{tpu_custom_call.1} parent=11 // pred_fallthru
          _
        // Predicated region
        $region29: #{tpu_custom_call.1} parent=11 // pred_check
          %p308 = pneg %p156
        $region30: #{tpu_custom_call.1} parent=11 // pred_check_branch
          %310 = sbr.rel (%p308) target = $region32
        $region31: #{tpu_custom_call.1} parent=11 // pred_region
          %s312 = ssub.s32 896, 896
          %313 = vsyncadd [#allocation12], %s312
          %s314 = sshll.u32 [#allocation11], 4
          %s315 = int_to_ptr.vmem [resolvable:$true] %s314
          %320 = dma.hbm_to_vmem [thread:$0]  %s5, 896, %s315, [#allocation12], 128, 128, 8
        $region32: #{tpu_custom_call.1} parent=11 // pred_fallthru
          _
        // Predicated region
        $region33: #{tpu_custom_call.1} parent=11 // pred_check
          %p321 = pneg %p177
        $region34: #{tpu_custom_call.1} parent=11 // pred_check_branch
          %323 = sbr.rel (%p321) target = $region36
        $region35: #{tpu_custom_call.1} parent=11 // pred_region
          %s325 = ssub.s32 128, 128
          %326 = vsyncadd [#allocation12], %s325
          %s328 = sshll.u32 [#allocation13], 4
          %s329 = int_to_ptr.vmem [resolvable:$true] %s328
          %331 = dma.hbm_to_vmem [thread:$0]  %s6, 128, %s329, [#allocation12]
        $region36: #{tpu_custom_call.1} parent=11 // pred_fallthru
          _
        // Predicated region
        $region37: #{tpu_custom_call.1} parent=11 // pred_check
          %p332 = pneg %p198
        $region38: #{tpu_custom_call.1} parent=11 // pred_check_branch
          %334 = sbr.rel (%p332) target = $region40
        $region39: #{tpu_custom_call.1} parent=11 // pred_region
          %s336 = ssub.s32 896, 896
          %337 = vsyncadd [#allocation15], %s336
          %s338 = sshll.u32 [#allocation14], 4
          %s339 = int_to_ptr.vmem [resolvable:$true] %s338
          %344 = dma.hbm_to_vmem [thread:$0]  %s7, 896, %s339, [#allocation15], 128, 128, 8
        $region40: #{tpu_custom_call.1} parent=11 // pred_fallthru
          _
        // Predicated region
        $region41: #{tpu_custom_call.1} parent=11 // pred_check
          %p345 = pneg %p219
        $region42: #{tpu_custom_call.1} parent=11 // pred_check_branch
          %347 = sbr.rel (%p345) target = $region44
        $region43: #{tpu_custom_call.1} parent=11 // pred_region
          %s349 = ssub.s32 128, 128
          %350 = vsyncadd [#allocation15], %s349
          %s352 = sshll.u32 [#allocation16], 4
          %s353 = int_to_ptr.vmem [resolvable:$true] %s352
          %355 = dma.hbm_to_vmem [thread:$0]  %s8, 128, %s353, [#allocation15]
        $region44: #{tpu_custom_call.1} parent=11 // pred_fallthru
          _
      $region12: #{tpu_custom_call.1} parent=5 // pred_fallthru
        _
      %p356 = scmp.lt.s32.totalorder %s25, 2
      // Predicated region
      $region45: #{tpu_custom_call.1} parent=5 // pred_check
        %p357 = pneg %p356
      $region46: #{tpu_custom_call.1} parent=5 // pred_check_branch
        %359 = sbr.rel (%p357) target = $region48
      $region47: #{tpu_custom_call.1} parent=5 // pred_region
        // Predicated region
        $region49: #{tpu_custom_call.1} parent=47 // pred_check
          %p360 = pneg %p45
        $region50: #{tpu_custom_call.1} parent=47 // pred_check_branch
          %362 = sbr.rel (%p360) target = $region52
        $region51: #{tpu_custom_call.1} parent=47 // pred_region
          %s363 = sand.u32 %s35, 1
          %s364 = scalar_lea.sflag [#allocation3], %s363
          %s365 = sand.u32 %s35, 1
          %s366 = smul.addr %s365, 8
          %s367 = scalar_lea.vmem [#allocation2], %s366
          %s369 = ssub.s32 128, 128
          %370 = vsyncadd %s364, %s369
          %s371 = smul.addr %s25, 2
          %s372 = smul.addr %s371, 64
          %s373 = scalar_lea.hbm %s0, %s372
          %s375 = sshll.u32 %s367, 4
          %s376 = int_to_ptr.vmem [resolvable:$true] %s375
          %378 = dma.hbm_to_vmem [thread:$0]  %s373, 128, %s376, %s364
        $region52: #{tpu_custom_call.1} parent=47 // pred_fallthru
          _
      $region48: #{tpu_custom_call.1} parent=5 // pred_fallthru
        _
      %p379 = scmp.le.s32.totalorder 1, %s25
      %p380 = scmp.lt.s32.totalorder %s25, 3
      %p381 = pnand %p379, %p380
      %p382 = pneg %p381
      // Predicated region
      $region53: #{tpu_custom_call.1} parent=5 // pred_check
        _
      $region54: #{tpu_custom_call.1} parent=5 // pred_check_branch
        %384 = sbr.rel (%p381) target = $region56
      $region55: #{tpu_custom_call.1} parent=5 // pred_region
        %s385 = ssub.s32 %s25, 1
        %s386 = sand.u32 %s38, 1
        %s387 = scalar_lea.sflag [#allocation3], %s386
        %s388 = sand.u32 %s38, 1
        %s389 = smul.addr %s388, 8
        %s390 = scalar_lea.vmem [#allocation2], %s389
        // Predicated region
        $region57: #{tpu_custom_call.1} parent=55 // pred_check
          %p391 = pneg %p51
        $region58: #{tpu_custom_call.1} parent=55 // pred_check_branch
          %393 = sbr.rel (%p391) target = $region60
        $region59: #{tpu_custom_call.1} parent=55 // pred_region
          %394 = dma.done %s387, 128
        $region60: #{tpu_custom_call.1} parent=55 // pred_fallthru
          _
        // Predicated region
        $region61: #{tpu_custom_call.1} parent=55 // pred_check
          %p395 = pneg %p72
        $region62: #{tpu_custom_call.1} parent=55 // pred_check_branch
          %397 = sbr.rel (%p395) target = $region64
        $region63: #{tpu_custom_call.1} parent=55 // pred_region
          %398 = dma.done [#allocation6], 896
        $region64: #{tpu_custom_call.1} parent=55 // pred_fallthru
          _
        // Predicated region
        $region65: #{tpu_custom_call.1} parent=55 // pred_check
          %p399 = pneg %p93
        $region66: #{tpu_custom_call.1} parent=55 // pred_check_branch
          %401 = sbr.rel (%p399) target = $region68
        $region67: #{tpu_custom_call.1} parent=55 // pred_region
          %402 = dma.done [#allocation6], 128
        $region68: #{tpu_custom_call.1} parent=55 // pred_fallthru
          _
        // Predicated region
        $region69: #{tpu_custom_call.1} parent=55 // pred_check
          %p403 = pneg %p114
        $region70: #{tpu_custom_call.1} parent=55 // pred_check_branch
          %405 = sbr.rel (%p403) target = $region72
        $region71: #{tpu_custom_call.1} parent=55 // pred_region
          %406 = dma.done [#allocation9], 896
        $region72: #{tpu_custom_call.1} parent=55 // pred_fallthru
          _
        // Predicated region
        $region73: #{tpu_custom_call.1} parent=55 // pred_check
          %p407 = pneg %p135
        $region74: #{tpu_custom_call.1} parent=55 // pred_check_branch
          %409 = sbr.rel (%p407) target = $region76
        $region75: #{tpu_custom_call.1} parent=55 // pred_region
          %410 = dma.done [#allocation9], 128
        $region76: #{tpu_custom_call.1} parent=55 // pred_fallthru
          _
        // Predicated region
        $region77: #{tpu_custom_call.1} parent=55 // pred_check
          %p411 = pneg %p156
        $region78: #{tpu_custom_call.1} parent=55 // pred_check_branch
          %413 = sbr.rel (%p411) target = $region80
        $region79: #{tpu_custom_call.1} parent=55 // pred_region
          %414 = dma.done [#allocation12], 896
        $region80: #{tpu_custom_call.1} parent=55 // pred_fallthru
          _
        // Predicated region
        $region81: #{tpu_custom_call.1} parent=55 // pred_check
          %p415 = pneg %p177
        $region82: #{tpu_custom_call.1} parent=55 // pred_check_branch
          %417 = sbr.rel (%p415) target = $region84
        $region83: #{tpu_custom_call.1} parent=55 // pred_region
          %418 = dma.done [#allocation12], 128
        $region84: #{tpu_custom_call.1} parent=55 // pred_fallthru
          _
        // Predicated region
        $region85: #{tpu_custom_call.1} parent=55 // pred_check
          %p419 = pneg %p198
        $region86: #{tpu_custom_call.1} parent=55 // pred_check_branch
          %421 = sbr.rel (%p419) target = $region88
        $region87: #{tpu_custom_call.1} parent=55 // pred_region
          %422 = dma.done [#allocation15], 896
        $region88: #{tpu_custom_call.1} parent=55 // pred_fallthru
          _
        // Predicated region
        $region89: #{tpu_custom_call.1} parent=55 // pred_check
          %p423 = pneg %p219
        $region90: #{tpu_custom_call.1} parent=55 // pred_check_branch
          %425 = sbr.rel (%p423) target = $region92
        $region91: #{tpu_custom_call.1} parent=55 // pred_region
          %426 = dma.done [#allocation15], 128
        $region92: #{tpu_custom_call.1} parent=55 // pred_fallthru
          _
        %s427 = sand.u32 %s38, 1
        %s428 = scalar_lea.sflag [#allocation3], %s427
        %s429 = sand.u32 %s38, 1
        %s430 = smul.addr %s429, 8
        %s431 = scalar_lea.vmem [#allocation2], %s430
        %p432 = pneg %p51
        %p433 = pneg %p48
        %p434 = pneg %p72
        %p435 = pneg %p69
        %p436 = pneg %p93
        %p437 = pneg %p90
        %p438 = pneg %p114
        %p439 = pneg %p111
        %p440 = pneg %p135
        %p441 = pneg %p132
        %p442 = pneg %p156
        %p443 = pneg %p153
        %p444 = pneg %p177
        %p445 = pneg %p174
        %p446 = pneg %p198
        %p447 = pneg %p195
        %p448 = pneg %p219
        %p449 = pneg %p216
        %p450 = pneg %p245
        %p451 = pneg %p242
        %s452 = sand.u32 %s232, 1
        %s453 = scalar_lea.sflag [#allocation4], %s452
        %s454 = sand.u32 %s232, 1
        %s455 = smul.addr %s454, 16
        %s456 = scalar_lea.vmem [#allocation17], %s455
        %v457 = vld [vmem:[%s390] sm:$0xff]
        %v458 = vlaneseq
        %v459 = vand.u32 %v458, 127
        %v460 = vadd.s32 %v459, 128
        %vm461 = vcmp.lt.s32.totalorder %v459, 0
        %v462 = vsub.s32 0, %v459
        %v463 = vsel %vm461, %v462, %v459
        %v464 = vshrl.u32 %v463, 4
        %v465 = vand.u32 %v463, 15
        %v466 = vsub.s32 0, %v465
        %v467 = vsel %vm461, %v466, %v465
        %vm468 = vcmp.lt.s32.totalorder %v460, 0
        %v469 = vsub.s32 0, %v460
        %v470 = vsel %vm468, %v469, %v460
        %v471 = vshrl.u32 %v470, 4
        %v472 = vand.u32 %v470, 15
        %v473 = vsub.s32 0, %v472
        %v474 = vsel %vm468, %v473, %v472
        %vm475 = vcmp.ne.s32.totalorder %v467, 0
        %vm476 = vcmp.ne.s32.totalorder %v474, 0
        %vm477 = vcmp.lt.s32.totalorder %v467, 0
        %vm478 = vcmp.lt.s32.totalorder %v474, 0
        %vm479 = vmand %vm477, %vm475
        %vm480 = vmand %vm478, %vm476
        %v481 = vadd.s32 %v467, 16
        %v482 = vadd.s32 %v474, 16
        %v483 = vsel %vm479, %v481, %v467
        %v484 = vsel %vm480, %v482, %v474
        %v485 = vadd.s32 %v483, 4294967293
        %v486 = vadd.s32 %v484, 4294967293
        %vm487 = vcmp.ge.s32.totalorder %v485, 0
        %vm488 = vcmp.ge.s32.totalorder %v486, 0
        %vm489 = vcmp.lt.s32.totalorder %v485, 16
        %vm490 = vcmp.lt.s32.totalorder %v486, 16
        %vm491 = vmand %vm487, %vm489
        %vm492 = vmand %vm488, %vm490
        %v493 = vadd.s32 %v483, 4294967294
        %v494 = vadd.s32 %v484, 4294967294
        %vm495 = vcmp.ge.s32.totalorder %v493, 0
        %vm496 = vcmp.ge.s32.totalorder %v494, 0
        %vm497 = vcmp.lt.s32.totalorder %v493, 16
        %vm498 = vcmp.lt.s32.totalorder %v494, 16
        %vm499 = vmand %vm495, %vm497
        %vm500 = vmand %vm496, %vm498
        %v501 = vadd.s32 %v483, 4294967295
        %v502 = vadd.s32 %v484, 4294967295
        %vm503 = vcmp.ge.s32.totalorder %v501, 0
        %vm504 = vcmp.ge.s32.totalorder %v502, 0
        %vm505 = vcmp.lt.s32.totalorder %v501, 16
        %vm506 = vcmp.lt.s32.totalorder %v502, 16
        %vm507 = vmand %vm503, %vm505
        %vm508 = vmand %vm504, %vm506
        %v509 = vadd.s32 %v483, 1
        %v510 = vadd.s32 %v484, 1
        %vm511 = vcmp.ge.s32.totalorder %v509, 0
        %vm512 = vcmp.ge.s32.totalorder %v510, 0
        %vm513 = vcmp.lt.s32.totalorder %v509, 16
        %vm514 = vcmp.lt.s32.totalorder %v510, 16
        %vm515 = vmand %vm511, %vm513
        %vm516 = vmand %vm512, %vm514
        %v517 = vadd.s32 %v483, 2
        %v518 = vadd.s32 %v484, 2
        %vm519 = vcmp.ge.s32.totalorder %v517, 0
        %vm520 = vcmp.ge.s32.totalorder %v518, 0
        %vm521 = vcmp.lt.s32.totalorder %v517, 16
        %vm522 = vcmp.lt.s32.totalorder %v518, 16
        %vm523 = vmand %vm519, %vm521
        %vm524 = vmand %vm520, %vm522
        %v525 = vadd.s32 %v483, 3
        %v526 = vadd.s32 %v484, 3
        %vm527 = vcmp.ge.s32.totalorder %v525, 0
        %vm528 = vcmp.ge.s32.totalorder %v526, 0
        %vm529 = vcmp.lt.s32.totalorder %v525, 16
        %vm530 = vcmp.lt.s32.totalorder %v526, 16
        %vm531 = vmand %vm527, %vm529
        %vm532 = vmand %vm528, %vm530
        %v533 = vld [vmem:[#allocation5] sm:$0xff]
        %v534 = vld [vmem:[#allocation5 + $0x8] sm:$0xff]
        %v535 = vld [vmem:[#allocation5 + $0x10] sm:$0xff]
        %v536 = vld [vmem:[#allocation5 + $0x18] sm:$0xff]
        %v537 = vld [vmem:[#allocation5 + $0x20] sm:$0xff]
        %v538 = vld [vmem:[#allocation5 + $0x28] sm:$0xff]
        %v539 = vld [vmem:[#allocation5 + $0x30] sm:$0xff]
        %v541 = vcombine.high %v457, %v457
        %vm542 = vcmask 31744
        %v544 = vsel %vm542, %v533, 0
        %v547 = vsel %vm542, %v534, 0
        %v550 = vsel %vm542, %v535, 0
        %v553 = vsel %vm542, %v536, 0
        %v556 = vsel %vm542, %v537, 0
        %v559 = vsel %vm542, %v538, 0
        %v562 = vsel %vm542, %v539, 0
        %vm564 = vcmask 1043456
        %v565 = vsel %vm564, %v457, 0
        %v567 = vsel %vm564, %v541, 0
        %569 = vmatprep.subr.mxu0 %v567
        %570 = vmatpush1.msra.mxu0 %v565
        %571 = vmatprep.subr.mxu0 0.0
        %572 = vmatpush1.msra.mxu0 0.0
        %573 = vmatprep.subr.mxu0 0.0
        %574 = vmatpush1.msra.mxu0 0.0
        %575 = vmatprep.subr.mxu0 0.0
        %576 = vmatpush1.msra.mxu0 0.0
        %577 = vmatprep.subr.mxu0 0.0
        %578 = vmatpush1.msra.mxu0 0.0
        %579 = vmatprep.subr.mxu0 0.0
        %580 = vmatpush1.msra.mxu0 0.0
        %581 = vmatprep.subr.mxu0 0.0
        %582 = vmatpush1.msra.mxu0 0.0
        %583 = vmatprep.subr.mxu0 0.0
        %584 = vmatpush1.msra.mxu0 0.0
        %585 = vmatprep.subr.mxu0 0.0
        %586 = vmatpush1.msra.mxu0 0.0
        %587 = vmatprep.subr.mxu0 0.0
        %588 = vmatpush1.msra.mxu0 0.0
        %589 = vmatprep.subr.mxu0 0.0
        %590 = vmatpush1.msra.mxu0 0.0
        %591 = vmatprep.subr.mxu0 0.0
        %592 = vmatpush1.msra.mxu0 0.0
        %593 = vmatprep.subr.mxu0 0.0
        %594 = vmatpush1.msra.mxu0 0.0
        %595 = vmatprep.subr.mxu0 0.0
        %596 = vmatpush1.msra.mxu0 0.0
        %597 = vmatprep.subr.mxu0 0.0
        %598 = vmatpush1.msra.mxu0 0.0
        %599 = vmatprep.subr.mxu0 0.0
        %600 = vmatpush1.msra.mxu0 0.0
        %601 = vmatprep.subr.mxu0 0.0
        %602 = vmatpush1.msra.mxu0 0.0
        %603 = vmatprep.subr.mxu0 0.0
        %604 = vmatpush1.msra.mxu0 0.0
        %605 = vmatprep.subr.mxu0 0.0
        %606 = vmatpush1.msra.mxu0 0.0
        %607 = vmatprep.subr.mxu0 0.0
        %608 = vmatpush1.msra.mxu0 0.0
        %609 = vmatprep.subr.mxu0 0.0
        %610 = vmatpush1.msra.mxu0 0.0
        %611 = vmatprep.subr.mxu0 0.0
        %612 = vmatpush1.msra.mxu0 0.0
        %613 = vmatprep.subr.mxu0 0.0
        %614 = vmatpush1.msra.mxu0 0.0
        %615 = vmatprep.subr.mxu0 0.0
        %616 = vmatpush1.msra.mxu0 0.0
        %617 = vmatprep.subr.mxu0 0.0
        %618 = vmatpush1.msra.mxu0 0.0
        %619 = vmatprep.subr.mxu0 0.0
        %620 = vmatpush1.msra.mxu0 0.0
        %621 = vmatprep.subr.mxu0 0.0
        %622 = vmatpush1.msra.mxu0 0.0
        %623 = vmatprep.subr.mxu0 0.0
        %624 = vmatpush1.msra.mxu0 0.0
        %625 = vmatprep.subr.mxu0 0.0
        %626 = vmatpush1.msra.mxu0 0.0
        %627 = vmatprep.subr.mxu0 0.0
        %628 = vmatpush1.msra.mxu0 0.0
        %629 = vmatprep.subr.mxu0 0.0
        %630 = vmatpush1.msra.mxu0 0.0
        %631 = vmatprep.subr.mxu0 0.0
        %632 = vmatpush1.msra.mxu0 0.0
        %633 = vmatprep.mubr.f32.mxu0 0.0
        %634 = vmatmul.mubr.f32.gmra.mrb[0].mxu0 %v544
        %v635 = vpop.f32.mrb[0].mxu0
        %v636 = vadd.f32 0.0, %v635
        %v637 = vpop.f32.mrb[0].mxu0
        %v638 = vadd.f32 0.0, %v637
        %639 = vmatprep.mubr.f32.mxu0 0.0
        %640 = vmatmul.mubr.f32.gmra.mrb[0].mxu0 %v547
        %v641 = vpop.f32.mrb[0].mxu0
        %v642 = vadd.f32 0.0, %v641
        %v643 = vpop.f32.mrb[0].mxu0
        %v644 = vadd.f32 0.0, %v643
        %645 = vmatprep.mubr.f32.mxu0 0.0
        %646 = vmatmul.mubr.f32.gmra.mrb[0].mxu0 %v550
        %v647 = vpop.f32.mrb[0].mxu0
        %v648 = vadd.f32 0.0, %v647
        %v649 = vpop.f32.mrb[0].mxu0
        %v650 = vadd.f32 0.0, %v649
        %651 = vmatprep.mubr.f32.mxu0 0.0
        %652 = vmatmul.mubr.f32.gmra.mrb[0].mxu0 %v553
        %v653 = vpop.f32.mrb[0].mxu0
        %v654 = vadd.f32 0.0, %v653
        %v655 = vpop.f32.mrb[0].mxu0
        %v656 = vadd.f32 0.0, %v655
        %657 = vmatprep.mubr.f32.mxu0 0.0
        %658 = vmatmul.mubr.f32.gmra.mrb[0].mxu0 %v556
        %v659 = vpop.f32.mrb[0].mxu0
        %v660 = vadd.f32 0.0, %v659
        %v661 = vpop.f32.mrb[0].mxu0
        %v662 = vadd.f32 0.0, %v661
        %663 = vmatprep.mubr.f32.mxu0 0.0
        %664 = vmatmul.mubr.f32.gmra.mrb[0].mxu0 %v559
        %v665 = vpop.f32.mrb[0].mxu0
        %v666 = vadd.f32 0.0, %v665
        %v667 = vpop.f32.mrb[0].mxu0
        %v668 = vadd.f32 0.0, %v667
        %669 = vmatprep.mubr.f32.mxu0 0.0
        %670 = vmatmul.mubr.f32.gmra.mrb[0].mxu0 %v562
        %v671 = vpop.f32.mrb[0].mxu0
        %v672 = vadd.f32 0.0, %v671
        %v673 = vpop.f32.mrb[0].mxu0
        %v674 = vadd.f32 0.0, %v673
        %675 = vdwg.mxu0
        %v676 = vld [vmem:[#allocation7] sm:$0xff]
        %678 = vset.pattern.permute.xlu0 0
        %679 = vperm.xlu0 %678, %v676
        %v680 = vpop.permute.xlu0 %679
        %v682 = vadd.f32 %v654, %v680
        %v683 = vadd.f32 %v656, %v680
        %686 = vrot.lane.b32.xlu0 %v636, 48
        %v687 = vpop.permute.xlu0 %686
        %688 = vrot.lane.b32.xlu0 %v638, 48
        %v689 = vpop.permute.xlu0 %688
        %vm690 = vcmask 392192
        %v691 = vsel %vm690, %v687, %v689
        %v694 = vsel %vm690, 0.0, %v687
        %v695 = vadd.f32 %v682, %v694
        %v696 = vadd.f32 %v683, %v691
        %699 = vrot.lane.b32.xlu0 %v642, 32
        %v700 = vpop.permute.xlu0 %699
        %701 = vrot.lane.b32.xlu0 %v644, 32
        %v702 = vpop.permute.xlu0 %701
        %vm703 = vcmask 261120
        %v704 = vsel %vm703, %v700, %v702
        %v707 = vsel %vm703, 0.0, %v700
        %v708 = vadd.f32 %v695, %v707
        %v709 = vadd.f32 %v696, %v704
        %712 = vrot.lane.b32.xlu0 %v648, 16
        %v713 = vpop.permute.xlu0 %712
        %714 = vrot.lane.b32.xlu0 %v650, 16
        %v715 = vpop.permute.xlu0 %714
        %vm716 = vcmask 130048
        %v717 = vsel %vm716, %v713, %v715
        %v720 = vsel %vm716, 0.0, %v713
        %v721 = vadd.f32 %v708, %v720
        %v722 = vadd.f32 %v709, %v717
        %725 = vrot.lane.b32.xlu0 %v660, 112
        %v726 = vpop.permute.xlu0 %725
        %727 = vrot.lane.b32.xlu0 %v662, 112
        %v728 = vpop.permute.xlu0 %727
        %vm729 = vcmask 916480
        %v730 = vsel %vm729, %v726, %v728
        %v733 = vsel %vm729, %v728, 0.0
        %v734 = vadd.f32 %v721, %v730
        %v735 = vadd.f32 %v722, %v733
        %738 = vrot.lane.b32.xlu0 %v666, 96
        %v739 = vpop.permute.xlu0 %738
        %740 = vrot.lane.b32.xlu0 %v668, 96
        %v741 = vpop.permute.xlu0 %740
        %vm742 = vcmask 785408
        %v743 = vsel %vm742, %v739, %v741
        %v746 = vsel %vm742, %v741, 0.0
        %v747 = vadd.f32 %v734, %v743
        %v748 = vadd.f32 %v735, %v746
        %751 = vrot.lane.b32.xlu0 %v672, 80
        %v752 = vpop.permute.xlu0 %751
        %753 = vrot.lane.b32.xlu0 %v674, 80
        %v754 = vpop.permute.xlu0 %753
        %vm755 = vcmask 654336
        %v756 = vsel %vm755, %v752, %v754
        %v759 = vsel %vm755, %v754, 0.0
        %v760 = vadd.f32 %v747, %v756
        %v761 = vadd.f32 %v748, %v759
        %v762 = vld [vmem:[#allocation8] sm:$0xff]
        %v763 = vld [vmem:[#allocation8 + $0x8] sm:$0xff]
        %v764 = vld [vmem:[#allocation8 + $0x10] sm:$0xff]
        %v765 = vld [vmem:[#allocation8 + $0x18] sm:$0xff]
        %v766 = vld [vmem:[#allocation8 + $0x20] sm:$0xff]
        %v767 = vld [vmem:[#allocation8 + $0x28] sm:$0xff]
        %v768 = vld [vmem:[#allocation8 + $0x30] sm:$0xff]
        %vm769 = vcmask 64512
        %v771 = vsel %vm769, %v762, 0
        %v774 = vsel %vm769, %v763, 0
        %v777 = vsel %vm769, %v764, 0
        %v780 = vsel %vm769, %v765, 0
        %v783 = vsel %vm769, %v766, 0
        %v786 = vsel %vm769, %v767, 0
        %v789 = vsel %vm769, %v768, 0
        %791 = vmatprep.subr.mxu0 %v761
        %792 = vmatpush1.msra.mxu0 %v760
        %793 = vmatprep.subr.mxu0 0.0
        %794 = vmatpush1.msra.mxu0 0.0
        %795 = vmatprep.subr.mxu0 0.0
        %796 = vmatpush1.msra.mxu0 0.0
        %797 = vmatprep.subr.mxu0 0.0
        %798 = vmatpush1.msra.mxu0 0.0
        %799 = vmatprep.subr.mxu0 0.0
        %800 = vmatpush1.msra.mxu0 0.0
        %801 = vmatprep.subr.mxu0 0.0
        %802 = vmatpush1.msra.mxu0 0.0
        %803 = vmatprep.subr.mxu0 0.0
        %804 = vmatpush1.msra.mxu0 0.0
        %805 = vmatprep.subr.mxu0 0.0
        %806 = vmatpush1.msra.mxu0 0.0
        %807 = vmatprep.subr.mxu0 0.0
        %808 = vmatpush1.msra.mxu0 0.0
        %809 = vmatprep.subr.mxu0 0.0
        %810 = vmatpush1.msra.mxu0 0.0
        %811 = vmatprep.subr.mxu0 0.0
        %812 = vmatpush1.msra.mxu0 0.0
        %813 = vmatprep.subr.mxu0 0.0
        %814 = vmatpush1.msra.mxu0 0.0
        %815 = vmatprep.subr.mxu0 0.0
        %816 = vmatpush1.msra.mxu0 0.0
        %817 = vmatprep.subr.mxu0 0.0
        %818 = vmatpush1.msra.mxu0 0.0
        %819 = vmatprep.subr.mxu0 0.0
        %820 = vmatpush1.msra.mxu0 0.0
        %821 = vmatprep.subr.mxu0 0.0
        %822 = vmatpush1.msra.mxu0 0.0
        %823 = vmatprep.subr.mxu0 0.0
        %824 = vmatpush1.msra.mxu0 0.0
        %825 = vmatprep.subr.mxu0 0.0
        %826 = vmatpush1.msra.mxu0 0.0
        %827 = vmatprep.subr.mxu0 0.0
        %828 = vmatpush1.msra.mxu0 0.0
        %829 = vmatprep.subr.mxu0 0.0
        %830 = vmatpush1.msra.mxu0 0.0
        %831 = vmatprep.subr.mxu0 0.0
        %832 = vmatpush1.msra.mxu0 0.0
        %833 = vmatprep.subr.mxu0 0.0
        %834 = vmatpush1.msra.mxu0 0.0
        %835 = vmatprep.subr.mxu0 0.0
        %836 = vmatpush1.msra.mxu0 0.0
        %837 = vmatprep.subr.mxu0 0.0
        %838 = vmatpush1.msra.mxu0 0.0
        %839 = vmatprep.subr.mxu0 0.0
        %840 = vmatpush1.msra.mxu0 0.0
        %841 = vmatprep.subr.mxu0 0.0
        %842 = vmatpush1.msra.mxu0 0.0
        %843 = vmatprep.subr.mxu0 0.0
        %844 = vmatpush1.msra.mxu0 0.0
        %845 = vmatprep.subr.mxu0 0.0
        %846 = vmatpush1.msra.mxu0 0.0
        %847 = vmatprep.subr.mxu0 0.0
        %848 = vmatpush1.msra.mxu0 0.0
        %849 = vmatprep.subr.mxu0 0.0
        %850 = vmatpush1.msra.mxu0 0.0
        %851 = vmatprep.subr.mxu0 0.0
        %852 = vmatpush1.msra.mxu0 0.0
        %853 = vmatprep.subr.mxu0 0.0
        %854 = vmatpush1.msra.mxu0 0.0
        %855 = vmatprep.mubr.f32.mxu0 0.0
        %856 = vmatmul.mubr.f32.gmra.mrb[0].mxu0 %v771
        %v857 = vpop.f32.mrb[0].mxu0
        %v858 = vadd.f32 0.0, %v857
        %v859 = vpop.f32.mrb[0].mxu0
        %v860 = vadd.f32 0.0, %v859
        %861 = vmatprep.mubr.f32.mxu0 0.0
        %862 = vmatmul.mubr.f32.gmra.mrb[0].mxu0 %v774
        %v863 = vpop.f32.mrb[0].mxu0
        %v864 = vadd.f32 0.0, %v863
        %v865 = vpop.f32.mrb[0].mxu0
        %v866 = vadd.f32 0.0, %v865
        %867 = vmatprep.mubr.f32.mxu0 0.0
        %868 = vmatmul.mubr.f32.gmra.mrb[0].mxu0 %v777
        %v869 = vpop.f32.mrb[0].mxu0
        %v870 = vadd.f32 0.0, %v869
        %v871 = vpop.f32.mrb[0].mxu0
        %v872 = vadd.f32 0.0, %v871
        %873 = vmatprep.mubr.f32.mxu0 0.0
        %874 = vmatmul.mubr.f32.gmra.mrb[0].mxu0 %v780
        %v875 = vpop.f32.mrb[0].mxu0
        %v876 = vadd.f32 0.0, %v875
        %v877 = vpop.f32.mrb[0].mxu0
        %v878 = vadd.f32 0.0, %v877
        %879 = vmatprep.mubr.f32.mxu0 0.0
        %880 = vmatmul.mubr.f32.gmra.mrb[0].mxu0 %v783
        %v881 = vpop.f32.mrb[0].mxu0
        %v882 = vadd.f32 0.0, %v881
        %v883 = vpop.f32.mrb[0].mxu0
        %v884 = vadd.f32 0.0, %v883
        %885 = vmatprep.mubr.f32.mxu0 0.0
        %886 = vmatmul.mubr.f32.gmra.mrb[0].mxu0 %v786
        %v887 = vpop.f32.mrb[0].mxu0
        %v888 = vadd.f32 0.0, %v887
        %v889 = vpop.f32.mrb[0].mxu0
        %v890 = vadd.f32 0.0, %v889
        %891 = vmatprep.mubr.f32.mxu0 0.0
        %892 = vmatmul.mubr.f32.gmra.mrb[0].mxu0 %v789
        %v893 = vpop.f32.mrb[0].mxu0
        %v894 = vadd.f32 0.0, %v893
        %v895 = vpop.f32.mrb[0].mxu0
        %v896 = vadd.f32 0.0, %v895
        %897 = vdwg.mxu0
        %v898 = vld [vmem:[#allocation10] sm:$0xff]
        %900 = vset.pattern.permute.xlu0 0
        %901 = vperm.xlu0 %900, %v898
        %v902 = vpop.permute.xlu0 %901
        %v904 = vadd.f32 %v876, %v902
        %v905 = vadd.f32 %v878, %v902
        %908 = vrot.lane.b32.xlu0 %v858, 3
        %v909 = vpop.permute.xlu0 %908
        %910 = vrot.lane.b32.xlu0 %v860, 3
        %v911 = vpop.permute.xlu0 %910
        %vm912 = vcmask 23552
        %v913 = vsel %vm912, %v909, %v911
        %v916 = vsel %vm912, 0.0, %v909
        %v917 = vsel %vm491, 1, 0
        %v918 = vsel %vm492, 1, 0
        %vm919 = vcmp.eq.s32.totalorder %v917, 1
        %vm920 = vcmp.eq.s32.totalorder %v918, 1
        %v921 = vsel %vm919, %v916, 0.0
        %v922 = vsel %vm920, %v913, 0.0
        %v923 = vadd.f32 %v904, %v921
        %v924 = vadd.f32 %v905, %v922
        %927 = vrot.lane.b32.xlu0 %v864, 2
        %v928 = vpop.permute.xlu0 %927
        %929 = vrot.lane.b32.xlu0 %v866, 2
        %v930 = vpop.permute.xlu0 %929
        %vm931 = vcmask 15360
        %v932 = vsel %vm931, %v928, %v930
        %v935 = vsel %vm931, 0.0, %v928
        %v936 = vsel %vm499, 1, 0
        %v937 = vsel %vm500, 1, 0
        %vm938 = vcmp.eq.s32.totalorder %v936, 1
        %vm939 = vcmp.eq.s32.totalorder %v937, 1
        %v940 = vsel %vm938, %v935, 0.0
        %v941 = vsel %vm939, %v932, 0.0
        %v942 = vadd.f32 %v923, %v940
        %v943 = vadd.f32 %v924, %v941
        %946 = vrot.lane.b32.xlu0 %v870, 1
        %v947 = vpop.permute.xlu0 %946
        %948 = vrot.lane.b32.xlu0 %v872, 1
        %v949 = vpop.permute.xlu0 %948
        %vm950 = vcmask 7168
        %v951 = vsel %vm950, %v947, %v949
        %v954 = vsel %vm950, 0.0, %v947
        %v955 = vsel %vm507, 1, 0
        %v956 = vsel %vm508, 1, 0
        %vm957 = vcmp.eq.s32.totalorder %v955, 1
        %vm958 = vcmp.eq.s32.totalorder %v956, 1
        %v959 = vsel %vm957, %v954, 0.0
        %v960 = vsel %vm958, %v951, 0.0
        %v961 = vadd.f32 %v942, %v959
        %v962 = vadd.f32 %v943, %v960
        %965 = vrot.lane.b32.xlu0 %v882, 127
        %v966 = vpop.permute.xlu0 %965
        %967 = vrot.lane.b32.xlu0 %v884, 127
        %v968 = vpop.permute.xlu0 %967
        %vm969 = vcmask 1039360
        %v970 = vsel %vm969, %v966, %v968
        %v973 = vsel %vm969, %v968, 0.0
        %v974 = vsel %vm515, 1, 0
        %v975 = vsel %vm516, 1, 0
        %vm976 = vcmp.eq.s32.totalorder %v974, 1
        %vm977 = vcmp.eq.s32.totalorder %v975, 1
        %v978 = vsel %vm976, %v970, 0.0
        %v979 = vsel %vm977, %v973, 0.0
        %v980 = vadd.f32 %v961, %v978
        %v981 = vadd.f32 %v962, %v979
        %984 = vrot.lane.b32.xlu0 %v888, 126
        %v985 = vpop.permute.xlu0 %984
        %986 = vrot.lane.b32.xlu0 %v890, 126
        %v987 = vpop.permute.xlu0 %986
        %vm988 = vcmask 1031168
        %v989 = vsel %vm988, %v985, %v987
        %v992 = vsel %vm988, %v987, 0.0
        %v993 = vsel %vm523, 1, 0
        %v994 = vsel %vm524, 1, 0
        %vm995 = vcmp.eq.s32.totalorder %v993, 1
        %vm996 = vcmp.eq.s32.totalorder %v994, 1
        %v997 = vsel %vm995, %v989, 0.0
        %v998 = vsel %vm996, %v992, 0.0
        %v999 = vadd.f32 %v980, %v997
        %v1000 = vadd.f32 %v981, %v998
        %1003 = vrot.lane.b32.xlu0 %v894, 125
        %v1004 = vpop.permute.xlu0 %1003
        %1005 = vrot.lane.b32.xlu0 %v896, 125
        %v1006 = vpop.permute.xlu0 %1005
        %vm1007 = vcmask 1022976
        %v1008 = vsel %vm1007, %v1004, %v1006
        %v1011 = vsel %vm1007, %v1006, 0.0
        %v1012 = vsel %vm531, 1, 0
        %v1013 = vsel %vm532, 1, 0
        %vm1014 = vcmp.eq.s32.totalorder %v1012, 1
        %vm1015 = vcmp.eq.s32.totalorder %v1013, 1
        %v1016 = vsel %vm1014, %v1008, 0.0
        %v1017 = vsel %vm1015, %v1011, 0.0
        %v1018 = vadd.f32 %v999, %v1016
        %v1019 = vadd.f32 %v1000, %v1017
        %v1020 = vld [vmem:[#allocation11] sm:$0xff]
        %v1021 = vld [vmem:[#allocation11 + $0x8] sm:$0xff]
        %v1022 = vld [vmem:[#allocation11 + $0x10] sm:$0xff]
        %v1023 = vld [vmem:[#allocation11 + $0x18] sm:$0xff]
        %v1024 = vld [vmem:[#allocation11 + $0x20] sm:$0xff]
        %v1025 = vld [vmem:[#allocation11 + $0x28] sm:$0xff]
        %v1026 = vld [vmem:[#allocation11 + $0x30] sm:$0xff]
        %v1028 = vsel %vm542, %v1020, 0
        %v1031 = vsel %vm542, %v1021, 0
        %v1034 = vsel %vm542, %v1022, 0
        %v1037 = vsel %vm542, %v1023, 0
        %v1040 = vsel %vm542, %v1024, 0
        %v1043 = vsel %vm542, %v1025, 0
        %v1046 = vsel %vm542, %v1026, 0
        %1048 = vmatprep.subr.mxu0 %v567
        %1049 = vmatpush1.msra.mxu0 %v565
        %1050 = vmatprep.subr.mxu0 0.0
        %1051 = vmatpush1.msra.mxu0 0.0
        %1052 = vmatprep.subr.mxu0 0.0
        %1053 = vmatpush1.msra.mxu0 0.0
        %1054 = vmatprep.subr.mxu0 0.0
        %1055 = vmatpush1.msra.mxu0 0.0
        %1056 = vmatprep.subr.mxu0 0.0
        %1057 = vmatpush1.msra.mxu0 0.0
        %1058 = vmatprep.subr.mxu0 0.0
        %1059 = vmatpush1.msra.mxu0 0.0
        %1060 = vmatprep.subr.mxu0 0.0
        %1061 = vmatpush1.msra.mxu0 0.0
        %1062 = vmatprep.subr.mxu0 0.0
        %1063 = vmatpush1.msra.mxu0 0.0
        %1064 = vmatprep.subr.mxu0 0.0
        %1065 = vmatpush1.msra.mxu0 0.0
        %1066 = vmatprep.subr.mxu0 0.0
        %1067 = vmatpush1.msra.mxu0 0.0
        %1068 = vmatprep.subr.mxu0 0.0
        %1069 = vmatpush1.msra.mxu0 0.0
        %1070 = vmatprep.subr.mxu0 0.0
        %1071 = vmatpush1.msra.mxu0 0.0
        %1072 = vmatprep.subr.mxu0 0.0
        %1073 = vmatpush1.msra.mxu0 0.0
        %1074 = vmatprep.subr.mxu0 0.0
        %1075 = vmatpush1.msra.mxu0 0.0
        %1076 = vmatprep.subr.mxu0 0.0
        %1077 = vmatpush1.msra.mxu0 0.0
        %1078 = vmatprep.subr.mxu0 0.0
        %1079 = vmatpush1.msra.mxu0 0.0
        %1080 = vmatprep.subr.mxu0 0.0
        %1081 = vmatpush1.msra.mxu0 0.0
        %1082 = vmatprep.subr.mxu0 0.0
        %1083 = vmatpush1.msra.mxu0 0.0
        %1084 = vmatprep.subr.mxu0 0.0
        %1085 = vmatpush1.msra.mxu0 0.0
        %1086 = vmatprep.subr.mxu0 0.0
        %1087 = vmatpush1.msra.mxu0 0.0
        %1088 = vmatprep.subr.mxu0 0.0
        %1089 = vmatpush1.msra.mxu0 0.0
        %1090 = vmatprep.subr.mxu0 0.0
        %1091 = vmatpush1.msra.mxu0 0.0
        %1092 = vmatprep.subr.mxu0 0.0
        %1093 = vmatpush1.msra.mxu0 0.0
        %1094 = vmatprep.subr.mxu0 0.0
        %1095 = vmatpush1.msra.mxu0 0.0
        %1096 = vmatprep.subr.mxu0 0.0
        %1097 = vmatpush1.msra.mxu0 0.0
        %1098 = vmatprep.subr.mxu0 0.0
        %1099 = vmatpush1.msra.mxu0 0.0
        %1100 = vmatprep.subr.mxu0 0.0
        %1101 = vmatpush1.msra.mxu0 0.0
        %1102 = vmatprep.subr.mxu0 0.0
        %1103 = vmatpush1.msra.mxu0 0.0
        %1104 = vmatprep.subr.mxu0 0.0
        %1105 = vmatpush1.msra.mxu0 0.0
        %1106 = vmatprep.subr.mxu0 0.0
        %1107 = vmatpush1.msra.mxu0 0.0
        %1108 = vmatprep.subr.mxu0 0.0
        %1109 = vmatpush1.msra.mxu0 0.0
        %1110 = vmatprep.subr.mxu0 0.0
        %1111 = vmatpush1.msra.mxu0 0.0
        %1112 = vmatprep.mubr.f32.mxu0 0.0
        %1113 = vmatmul.mubr.f32.gmra.mrb[0].mxu0 %v1028
        %v1114 = vpop.f32.mrb[0].mxu0
        %v1115 = vadd.f32 0.0, %v1114
        %v1116 = vpop.f32.mrb[0].mxu0
        %v1117 = vadd.f32 0.0, %v1116
        %1118 = vmatprep.mubr.f32.mxu0 0.0
        %1119 = vmatmul.mubr.f32.gmra.mrb[0].mxu0 %v1031
        %v1120 = vpop.f32.mrb[0].mxu0
        %v1121 = vadd.f32 0.0, %v1120
        %v1122 = vpop.f32.mrb[0].mxu0
        %v1123 = vadd.f32 0.0, %v1122
        %1124 = vmatprep.mubr.f32.mxu0 0.0
        %1125 = vmatmul.mubr.f32.gmra.mrb[0].mxu0 %v1034
        %v1126 = vpop.f32.mrb[0].mxu0
        %v1127 = vadd.f32 0.0, %v1126
        %v1128 = vpop.f32.mrb[0].mxu0
        %v1129 = vadd.f32 0.0, %v1128
        %1130 = vmatprep.mubr.f32.mxu0 0.0
        %1131 = vmatmul.mubr.f32.gmra.mrb[0].mxu0 %v1037
        %v1132 = vpop.f32.mrb[0].mxu0
        %v1133 = vadd.f32 0.0, %v1132
        %v1134 = vpop.f32.mrb[0].mxu0
        %v1135 = vadd.f32 0.0, %v1134
        %1136 = vmatprep.mubr.f32.mxu0 0.0
        %1137 = vmatmul.mubr.f32.gmra.mrb[0].mxu0 %v1040
        %v1138 = vpop.f32.mrb[0].mxu0
        %v1139 = vadd.f32 0.0, %v1138
        %v1140 = vpop.f32.mrb[0].mxu0
        %v1141 = vadd.f32 0.0, %v1140
        %1142 = vmatprep.mubr.f32.mxu0 0.0
        %1143 = vmatmul.mubr.f32.gmra.mrb[0].mxu0 %v1043
        %v1144 = vpop.f32.mrb[0].mxu0
        %v1145 = vadd.f32 0.0, %v1144
        %v1146 = vpop.f32.mrb[0].mxu0
        %v1147 = vadd.f32 0.0, %v1146
        %1148 = vmatprep.mubr.f32.mxu0 0.0
        %1149 = vmatmul.mubr.f32.gmra.mrb[0].mxu0 %v1046
        %v1150 = vpop.f32.mrb[0].mxu0
        %v1151 = vadd.f32 0.0, %v1150
        %v1152 = vpop.f32.mrb[0].mxu0
        %v1153 = vadd.f32 0.0, %v1152
        %1154 = vdwg.mxu0
        %v1155 = vld [vmem:[#allocation13] sm:$0xff]
        %1157 = vset.pattern.permute.xlu0 0
        %1158 = vperm.xlu0 %1157, %v1155
        %v1159 = vpop.permute.xlu0 %1158
        %v1161 = vadd.f32 %v1133, %v1159
        %v1162 = vadd.f32 %v1135, %v1159
        %1165 = vrot.lane.b32.xlu0 %v1115, 3
        %v1166 = vpop.permute.xlu0 %1165
        %1167 = vrot.lane.b32.xlu0 %v1117, 3
        %v1168 = vpop.permute.xlu0 %1167
        %v1169 = vsel %vm912, %v1166, %v1168
        %v1172 = vsel %vm912, 0.0, %v1166
        %v1173 = vsel %vm919, %v1172, 0.0
        %v1174 = vsel %vm920, %v1169, 0.0
        %v1175 = vadd.f32 %v1161, %v1173
        %v1176 = vadd.f32 %v1162, %v1174
        %1179 = vrot.lane.b32.xlu0 %v1121, 2
        %v1180 = vpop.permute.xlu0 %1179
        %1181 = vrot.lane.b32.xlu0 %v1123, 2
        %v1182 = vpop.permute.xlu0 %1181
        %v1183 = vsel %vm931, %v1180, %v1182
        %v1186 = vsel %vm931, 0.0, %v1180
        %v1187 = vsel %vm938, %v1186, 0.0
        %v1188 = vsel %vm939, %v1183, 0.0
        %v1189 = vadd.f32 %v1175, %v1187
        %v1190 = vadd.f32 %v1176, %v1188
        %1193 = vrot.lane.b32.xlu0 %v1127, 1
        %v1194 = vpop.permute.xlu0 %1193
        %1195 = vrot.lane.b32.xlu0 %v1129, 1
        %v1196 = vpop.permute.xlu0 %1195
        %v1197 = vsel %vm950, %v1194, %v1196
        %v1200 = vsel %vm950, 0.0, %v1194
        %v1201 = vsel %vm957, %v1200, 0.0
        %v1202 = vsel %vm958, %v1197, 0.0
        %v1203 = vadd.f32 %v1189, %v1201
        %v1204 = vadd.f32 %v1190, %v1202
        %1207 = vrot.lane.b32.xlu0 %v1139, 127
        %v1208 = vpop.permute.xlu0 %1207
        %1209 = vrot.lane.b32.xlu0 %v1141, 127
        %v1210 = vpop.permute.xlu0 %1209
        %v1211 = vsel %vm969, %v1208, %v1210
        %v1214 = vsel %vm969, %v1210, 0.0
        %v1215 = vsel %vm976, %v1211, 0.0
        %v1216 = vsel %vm977, %v1214, 0.0
        %v1217 = vadd.f32 %v1203, %v1215
        %v1218 = vadd.f32 %v1204, %v1216
        %1221 = vrot.lane.b32.xlu0 %v1145, 126
        %v1222 = vpop.permute.xlu0 %1221
        %1223 = vrot.lane.b32.xlu0 %v1147, 126
        %v1224 = vpop.permute.xlu0 %1223
        %v1225 = vsel %vm988, %v1222, %v1224
        %v1228 = vsel %vm988, %v1224, 0.0
        %v1229 = vsel %vm995, %v1225, 0.0
        %v1230 = vsel %vm996, %v1228, 0.0
        %v1231 = vadd.f32 %v1217, %v1229
        %v1232 = vadd.f32 %v1218, %v1230
        %1235 = vrot.lane.b32.xlu0 %v1151, 125
        %v1236 = vpop.permute.xlu0 %1235
        %1237 = vrot.lane.b32.xlu0 %v1153, 125
        %v1238 = vpop.permute.xlu0 %1237
        %v1239 = vsel %vm1007, %v1236, %v1238
        %v1242 = vsel %vm1007, %v1238, 0.0
        %v1243 = vsel %vm1014, %v1239, 0.0
        %v1244 = vsel %vm1015, %v1242, 0.0
        %v1245 = vadd.f32 %v1231, %v1243
        %v1246 = vadd.f32 %v1232, %v1244
        %v1247 = vld [vmem:[#allocation14] sm:$0xff]
        %v1248 = vld [vmem:[#allocation14 + $0x8] sm:$0xff]
        %v1249 = vld [vmem:[#allocation14 + $0x10] sm:$0xff]
        %v1250 = vld [vmem:[#allocation14 + $0x18] sm:$0xff]
        %v1251 = vld [vmem:[#allocation14 + $0x20] sm:$0xff]
        %v1252 = vld [vmem:[#allocation14 + $0x28] sm:$0xff]
        %v1253 = vld [vmem:[#allocation14 + $0x30] sm:$0xff]
        %v1255 = vsel %vm769, %v1247, 0
        %v1258 = vsel %vm769, %v1248, 0
        %v1261 = vsel %vm769, %v1249, 0
        %v1264 = vsel %vm769, %v1250, 0
        %v1267 = vsel %vm769, %v1251, 0
        %v1270 = vsel %vm769, %v1252, 0
        %v1273 = vsel %vm769, %v1253, 0
        %1275 = vmatprep.subr.mxu0 %v1246
        %1276 = vmatpush1.msra.mxu0 %v1245
        %1277 = vmatprep.subr.mxu0 0.0
        %1278 = vmatpush1.msra.mxu0 0.0
        %1279 = vmatprep.subr.mxu0 0.0
        %1280 = vmatpush1.msra.mxu0 0.0
        %1281 = vmatprep.subr.mxu0 0.0
        %1282 = vmatpush1.msra.mxu0 0.0
        %1283 = vmatprep.subr.mxu0 0.0
        %1284 = vmatpush1.msra.mxu0 0.0
        %1285 = vmatprep.subr.mxu0 0.0
        %1286 = vmatpush1.msra.mxu0 0.0
        %1287 = vmatprep.subr.mxu0 0.0
        %1288 = vmatpush1.msra.mxu0 0.0
        %1289 = vmatprep.subr.mxu0 0.0
        %1290 = vmatpush1.msra.mxu0 0.0
        %1291 = vmatprep.subr.mxu0 0.0
        %1292 = vmatpush1.msra.mxu0 0.0
        %1293 = vmatprep.subr.mxu0 0.0
        %1294 = vmatpush1.msra.mxu0 0.0
        %1295 = vmatprep.subr.mxu0 0.0
        %1296 = vmatpush1.msra.mxu0 0.0
        %1297 = vmatprep.subr.mxu0 0.0
        %1298 = vmatpush1.msra.mxu0 0.0
        %1299 = vmatprep.subr.mxu0 0.0
        %1300 = vmatpush1.msra.mxu0 0.0
        %1301 = vmatprep.subr.mxu0 0.0
        %1302 = vmatpush1.msra.mxu0 0.0
        %1303 = vmatprep.subr.mxu0 0.0
        %1304 = vmatpush1.msra.mxu0 0.0
        %1305 = vmatprep.subr.mxu0 0.0
        %1306 = vmatpush1.msra.mxu0 0.0
        %1307 = vmatprep.subr.mxu0 0.0
        %1308 = vmatpush1.msra.mxu0 0.0
        %1309 = vmatprep.subr.mxu0 0.0
        %1310 = vmatpush1.msra.mxu0 0.0
        %1311 = vmatprep.subr.mxu0 0.0
        %1312 = vmatpush1.msra.mxu0 0.0
        %1313 = vmatprep.subr.mxu0 0.0
        %1314 = vmatpush1.msra.mxu0 0.0
        %1315 = vmatprep.subr.mxu0 0.0
        %1316 = vmatpush1.msra.mxu0 0.0
        %1317 = vmatprep.subr.mxu0 0.0
        %1318 = vmatpush1.msra.mxu0 0.0
        %1319 = vmatprep.subr.mxu0 0.0
        %1320 = vmatpush1.msra.mxu0 0.0
        %1321 = vmatprep.subr.mxu0 0.0
        %1322 = vmatpush1.msra.mxu0 0.0
        %1323 = vmatprep.subr.mxu0 0.0
        %1324 = vmatpush1.msra.mxu0 0.0
        %1325 = vmatprep.subr.mxu0 0.0
        %1326 = vmatpush1.msra.mxu0 0.0
        %1327 = vmatprep.subr.mxu0 0.0
        %1328 = vmatpush1.msra.mxu0 0.0
        %1329 = vmatprep.subr.mxu0 0.0
        %1330 = vmatpush1.msra.mxu0 0.0
        %1331 = vmatprep.subr.mxu0 0.0
        %1332 = vmatpush1.msra.mxu0 0.0
        %1333 = vmatprep.subr.mxu0 0.0
        %1334 = vmatpush1.msra.mxu0 0.0
        %1335 = vmatprep.subr.mxu0 0.0
        %1336 = vmatpush1.msra.mxu0 0.0
        %1337 = vmatprep.subr.mxu0 0.0
        %1338 = vmatpush1.msra.mxu0 0.0
        %1339 = vmatprep.mubr.f32.mxu0 0.0
        %1340 = vmatmul.mubr.f32.gmra.mrb[0].mxu0 %v1255
        %v1341 = vpop.f32.mrb[0].mxu0
        %v1342 = vadd.f32 0.0, %v1341
        %v1343 = vpop.f32.mrb[0].mxu0
        %v1344 = vadd.f32 0.0, %v1343
        %1345 = vmatprep.mubr.f32.mxu0 0.0
        %1346 = vmatmul.mubr.f32.gmra.mrb[0].mxu0 %v1258
        %v1347 = vpop.f32.mrb[0].mxu0
        %v1348 = vadd.f32 0.0, %v1347
        %v1349 = vpop.f32.mrb[0].mxu0
        %v1350 = vadd.f32 0.0, %v1349
        %1351 = vmatprep.mubr.f32.mxu0 0.0
        %1352 = vmatmul.mubr.f32.gmra.mrb[0].mxu0 %v1261
        %v1353 = vpop.f32.mrb[0].mxu0
        %v1354 = vadd.f32 0.0, %v1353
        %v1355 = vpop.f32.mrb[0].mxu0
        %v1356 = vadd.f32 0.0, %v1355
        %1357 = vmatprep.mubr.f32.mxu0 0.0
        %1358 = vmatmul.mubr.f32.gmra.mrb[0].mxu0 %v1264
        %v1359 = vpop.f32.mrb[0].mxu0
        %v1360 = vadd.f32 0.0, %v1359
        %v1361 = vpop.f32.mrb[0].mxu0
        %v1362 = vadd.f32 0.0, %v1361
        %1363 = vmatprep.mubr.f32.mxu0 0.0
        %1364 = vmatmul.mubr.f32.gmra.mrb[0].mxu0 %v1267
        %v1365 = vpop.f32.mrb[0].mxu0
        %v1366 = vadd.f32 0.0, %v1365
        %v1367 = vpop.f32.mrb[0].mxu0
        %v1368 = vadd.f32 0.0, %v1367
        %1369 = vmatprep.mubr.f32.mxu0 0.0
        %1370 = vmatmul.mubr.f32.gmra.mrb[0].mxu0 %v1270
        %v1371 = vpop.f32.mrb[0].mxu0
        %v1372 = vadd.f32 0.0, %v1371
        %v1373 = vpop.f32.mrb[0].mxu0
        %v1374 = vadd.f32 0.0, %v1373
        %1375 = vmatprep.mubr.f32.mxu0 0.0
        %1376 = vmatmul.mubr.f32.gmra.mrb[0].mxu0 %v1273
        %v1377 = vpop.f32.mrb[0].mxu0
        %v1378 = vadd.f32 0.0, %v1377
        %v1379 = vpop.f32.mrb[0].mxu0
        %v1380 = vadd.f32 0.0, %v1379
        %1381 = vdwg.mxu0
        %v1382 = vld [vmem:[#allocation16] sm:$0xff]
        %1384 = vset.pattern.permute.xlu0 0
        %1385 = vperm.xlu0 %1384, %v1382
        %v1386 = vpop.permute.xlu0 %1385
        %v1388 = vadd.f32 %v1360, %v1386
        %v1389 = vadd.f32 %v1362, %v1386
        %1392 = vrot.lane.b32.xlu0 %v1342, 48
        %v1393 = vpop.permute.xlu0 %1392
        %1394 = vrot.lane.b32.xlu0 %v1344, 48
        %v1395 = vpop.permute.xlu0 %1394
        %v1396 = vsel %vm690, %v1393, %v1395
        %v1399 = vsel %vm690, 0.0, %v1393
        %v1400 = vadd.f32 %v1388, %v1399
        %v1401 = vadd.f32 %v1389, %v1396
        %1404 = vrot.lane.b32.xlu0 %v1348, 32
        %v1405 = vpop.permute.xlu0 %1404
        %1406 = vrot.lane.b32.xlu0 %v1350, 32
        %v1407 = vpop.permute.xlu0 %1406
        %v1408 = vsel %vm703, %v1405, %v1407
        %v1411 = vsel %vm703, 0.0, %v1405
        %v1412 = vadd.f32 %v1400, %v1411
        %v1413 = vadd.f32 %v1401, %v1408
        %1416 = vrot.lane.b32.xlu0 %v1354, 16
        %v1417 = vpop.permute.xlu0 %1416
        %1418 = vrot.lane.b32.xlu0 %v1356, 16
        %v1419 = vpop.permute.xlu0 %1418
        %v1420 = vsel %vm716, %v1417, %v1419
        %v1423 = vsel %vm716, 0.0, %v1417
        %v1424 = vadd.f32 %v1412, %v1423
        %v1425 = vadd.f32 %v1413, %v1420
        %1428 = vrot.lane.b32.xlu0 %v1366, 112
        %v1429 = vpop.permute.xlu0 %1428
        %1430 = vrot.lane.b32.xlu0 %v1368, 112
        %v1431 = vpop.permute.xlu0 %1430
        %v1432 = vsel %vm729, %v1429, %v1431
        %v1435 = vsel %vm729, %v1431, 0.0
        %v1436 = vadd.f32 %v1424, %v1432
        %v1437 = vadd.f32 %v1425, %v1435
        %1440 = vrot.lane.b32.xlu0 %v1372, 96
        %v1441 = vpop.permute.xlu0 %1440
        %1442 = vrot.lane.b32.xlu0 %v1374, 96
        %v1443 = vpop.permute.xlu0 %1442
        %v1444 = vsel %vm742, %v1441, %v1443
        %v1447 = vsel %vm742, %v1443, 0.0
        %v1448 = vadd.f32 %v1436, %v1444
        %v1449 = vadd.f32 %v1437, %v1447
        %1452 = vrot.lane.b32.xlu0 %v1378, 80
        %v1453 = vpop.permute.xlu0 %1452
        %1454 = vrot.lane.b32.xlu0 %v1380, 80
        %v1455 = vpop.permute.xlu0 %1454
        %v1456 = vsel %vm755, %v1453, %v1455
        %v1459 = vsel %vm755, %v1455, 0.0
        %v1460 = vadd.f32 %v1448, %v1456
        %v1461 = vadd.f32 %v1449, %v1459
        %v1462 = vadd.f32 %v1018, %v1460
        %v1463 = vadd.f32 %v1019, %v1461
        %1464 = vst [vmem:[%s456] sm:$0xff] %v1462
        %1465 = vst [vmem:[%s456 + $0x8] sm:$0xff] %v1463
        %s1466 = sand.u32 %s232, 1
        %s1467 = scalar_lea.sflag [#allocation4], %s1466
        %s1468 = sand.u32 %s232, 1
        %s1469 = smul.addr %s1468, 16
        %s1470 = scalar_lea.vmem [#allocation17], %s1469
        // Predicated region
        $region93: #{tpu_custom_call.1} parent=55 // pred_check
          %p1471 = pneg %p242
        $region94: #{tpu_custom_call.1} parent=55 // pred_check_branch
          %1473 = sbr.rel (%p1471) target = $region96
        $region95: #{tpu_custom_call.1} parent=55 // pred_region
          %s1475 = ssub.s32 256, 256
          %1476 = vsyncadd %s1467, %s1475
          %s1477 = smul.addr %s30, 2
          %s1478 = smul.addr %s1477, 128
          %s1479 = scalar_lea.hbm %s9, %s1478
          %s1481 = sshll.u32 %s1470, 4
          %s1482 = int_to_ptr.vmem [resolvable:$true] %s1481
          %1484 = dma.vmem_to_hbm [thread:$0]  %s1482, 256, %s1479, %s1467
        $region96: #{tpu_custom_call.1} parent=55 // pred_fallthru
          _
      $region56: #{tpu_custom_call.1} parent=5 // pred_fallthru
        _
      %p1485 = scmp.le.s32.totalorder 2, %s25
      // Predicated region
      $region97: #{tpu_custom_call.1} parent=5 // pred_check
        %p1486 = pneg %p1485
      $region98: #{tpu_custom_call.1} parent=5 // pred_check_branch
        %1488 = sbr.rel (%p1486) target = $region100
      $region99: #{tpu_custom_call.1} parent=5 // pred_region
        %s1489 = ssub.s32 %s25, 2
        // Predicated region
        $region101: #{tpu_custom_call.1} parent=99 // pred_check
          %p1490 = pneg %p248
        $region102: #{tpu_custom_call.1} parent=99 // pred_check_branch
          %1492 = sbr.rel (%p1490) target = $region104
        $region103: #{tpu_custom_call.1} parent=99 // pred_region
          %s1493 = sand.u32 %s233, 1
          %s1494 = scalar_lea.sflag [#allocation4], %s1493
          %s1495 = sand.u32 %s233, 1
          %s1496 = smul.addr %s1495, 16
          %s1497 = scalar_lea.vmem [#allocation17], %s1496
          %1498 = dma.done %s1494, 256
        $region104: #{tpu_custom_call.1} parent=99 // pred_fallthru
          _
      $region100: #{tpu_custom_call.1} parent=5 // pred_fallthru
        _
    $region6: #{tpu_custom_call.1} parent=1 // loop_footer
      %s29 = sadd.s32 1, %s25
    $region7: #{tpu_custom_call.1} parent=1 // loop_footer_branch
      %24 = sbr.rel target = $region3
    $region8: #{tpu_custom_call.1} parent=1 // loop_exit
      _
    %1499 = vsyncpa [#allocation3], 1
    %s1500 = scalar_lea.sflag [#allocation3], 1
    %1501 = vsyncpa %s1500, 1
    %1502 = vsyncpa [#allocation6], 1
    %1503 = vsyncpa [#allocation9], 1
    %1504 = vsyncpa [#allocation12], 1
    %1505 = vsyncpa [#allocation15], 1
    %1506 = vsyncpa [#allocation4], 1
    %s1507 = scalar_lea.sflag [#allocation4], 1
    %1508 = vsyncpa %s1507, 1

</llo_original>
